<compile_context>
chip_gen: v7x
topology: tpu7x:2x2x1
jax: 0.10.0
libtpu: 0.0.40
codegen_flags: <defaults>
</compile_context>

<pallas_src>
import functools

import jax
import jax.numpy as jnp
from jax.experimental import pallas as pl
from jax.experimental.pallas import tpu as pltpu


def _encoder_layer_kernel(x_ref, wqkv_ref, wo_ref, w1_ref, w2_ref, vec_ref,
                          o_ref, *, n_heads):
    bb, S, D = x_ref.shape
    dh = D // n_heads
    hidden_p = w1_ref.shape[1]

    x3 = x_ref[...]                                   # (bb, S, D) f32
    x2 = x3.reshape(bb * S, D)                        # leading-dim merge (S % 8 == 0)
    vecs = vec_ref[...]                               # (8, Wv) f32 padded slab

    b_qkv = vecs[0:1, :3 * D]                         # Q part already pre-scaled
    bo    = vecs[1:2, :D]
    g1    = vecs[2:3, :D]
    be1   = vecs[3:4, :D]
    b1    = vecs[4:5, :hidden_p]
    b2    = vecs[5:6, :D]
    g2    = vecs[6:7, :D]
    be2   = vecs[7:8, :D]

    # --- fused QKV projection: bf16 operands, f32 accumulation -------------
    qkv = jnp.dot(x2.astype(jnp.bfloat16), wqkv_ref[...],
                  preferred_element_type=jnp.float32) + b_qkv      # (bb*S, 3D)

    # --- per-head attention --------------------------------------------------
    # Static head loop (unrolled at trace time).  Each head uses a
    # single-batch-dim einsum; the per-head slice of Wo is accumulated directly
    # into the attention output, so no axis-0 / lane concatenation or
    # re-slicing of batched activation tensors is needed.
    # TODO(synk): for long sequences add a kv-block loop with online softmax
    # (flash style) so the S x S score matrix never materializes (v7x VMEM).
    wo_full = wo_ref[...]                                          # (D, D) bf16
    attn = jnp.zeros((bb * S, D), jnp.float32)
    for h in range(n_heads):
        q_h = qkv[:, h * dh:(h + 1) * dh].reshape(bb, S, dh)
        k_h = qkv[:, D + h * dh:D + (h + 1) * dh].reshape(bb, S, dh)
        v_h = qkv[:, 2 * D + h * dh:2 * D + (h + 1) * dh].reshape(bb, S, dh)

        s = jnp.einsum("bqd,bkd->bqk",
                       q_h.astype(jnp.bfloat16), k_h.astype(jnp.bfloat16),
                       preferred_element_type=jnp.float32)         # (bb, S, S)
        s = s - jnp.max(s, axis=-1, keepdims=True)
        p = jnp.exp(s)                                             # f32 softmax math
        p = p * pl.reciprocal(jnp.sum(p, axis=-1, keepdims=True), approx=True)

        ctx = jnp.einsum("bqk,bkd->bqd",
                         p.astype(jnp.bfloat16), v_h.astype(jnp.bfloat16),
                         preferred_element_type=jnp.float32)       # (bb, S, dh)

        attn += jnp.dot(ctx.reshape(bb * S, dh).astype(jnp.bfloat16),
                        wo_full[h * dh:(h + 1) * dh, :],
                        preferred_element_type=jnp.float32)
    attn = attn + bo

    def layer_norm(z, gamma, beta, eps=1e-5):
        mu = jnp.mean(z, axis=-1, keepdims=True)
        var = jnp.mean((z - mu) ** 2, axis=-1, keepdims=True)
        return (z - mu) * jax.lax.rsqrt(var + eps) * gamma + beta

    # post-norm branch #1
    y1 = layer_norm(attn + x2, g1, be1)

    # --- feed-forward (hidden width zero-padded to lane-dense multiple of 128)
    # TODO(synk): FeedForward activation assumed ReLU (module definition not shown).
    h1 = jnp.maximum(
        jnp.dot(y1.astype(jnp.bfloat16), w1_ref[...],
                preferred_element_type=jnp.float32) + b1, 0.0)
    ff = jnp.dot(h1.astype(jnp.bfloat16), w2_ref[...],
                 preferred_element_type=jnp.float32) + b2

    # post-norm branch #2
    y2 = layer_norm(ff + y1, g2, be2)
    o_ref[...] = y2.reshape(bb, S, D).astype(o_ref.dtype)


def _choose_batch_block(B, S, rows_per_step=512):
    """Largest batch block whose row tile stays <= rows_per_step, while keeping
    at least 2 grid steps (when B > 1) so DMA-in / compute / DMA-out pipeline."""
    divisors = [d for d in range(1, B + 1) if B % d == 0]
    fitting = [d for d in divisors if d * S <= rows_per_step] or [1]
    bb = max(fitting)
    if B > 1 and B // bb == 1:
        smaller = [d for d in fitting if d < B]
        bb = max(smaller) if smaller else 1
    return bb


def encoder_layer(x, params, n_heads):
    """x: (B, S, D) float32.  params: dict of per-layer weights (see _init_params)."""
    B, S, D = x.shape
    assert D % n_heads == 0, "d_att must be divisible by n_heads"
    assert S % 8 == 0, "seq len must be a multiple of 8 for cheap in-kernel reshapes"
    dh = D // n_heads
    hidden = params["w1"].shape[1]
    hidden_p = ((hidden + 127) // 128) * 128          # lane-dense FF hidden width
    scale = 1.0 / (dh ** 0.5)

    # --- consolidate / precondition parameters wrapper-side -----------------
    #  * fused QKV weight with 1/sqrt(dh) folded into the Q block (and bias)
    #  * matmul weights cast to bf16 (half the DMA bytes & VMEM footprint)
    #  * every bias / LayerNorm vector packed into one padded (8, Wv) f32 slab
    w_qkv = jnp.concatenate([params["wq"] * scale, params["wk"], params["wv"]],
                            axis=1).astype(jnp.bfloat16)           # (D, 3D)
    wo = params["wo"].astype(jnp.bfloat16)                         # (D, D)
    w1 = jnp.pad(params["w1"], ((0, 0), (0, hidden_p - hidden))).astype(jnp.bfloat16)
    w2 = jnp.pad(params["w2"], ((0, hidden_p - hidden), (0, 0))).astype(jnp.bfloat16)

    Wv = max(3 * D, hidden_p)

    def row(*vs):
        v = jnp.concatenate([jnp.asarray(t, jnp.float32).reshape(-1) for t in vs])
        return jnp.pad(v, (0, Wv - v.shape[0]))

    vecs = jnp.stack([
        row(params["bq"] * scale, params["bk"], params["bv"]),     # fused QKV bias
        row(params["bo"]), row(params["g1"]), row(params["be1"]),
        row(params["b1"], jnp.zeros((hidden_p - hidden,), jnp.float32)),
        row(params["b2"]), row(params["g2"]), row(params["be2"]),
    ], axis=0)                                                     # (8, Wv) f32

    bb = _choose_batch_block(B, S)
    steps = B // bb

    weights = [w_qkv, wo, w1, w2, vecs]

    def full_spec(a):
        nd = a.ndim
        return pl.BlockSpec(a.shape, lambda b, _nd=nd: (0,) * _nd)

    in_specs = [pl.BlockSpec((bb, S, D), lambda b: (b, 0, 0))] + \
               [full_spec(a) for a in weights]
    out_spec = pl.BlockSpec((bb, S, D), lambda b: (b, 0, 0))

    # --- VMEM budget / cost hints -------------------------------------------
    rows = bb * S
    weight_bytes = sum(int(a.size) * a.dtype.itemsize for a in weights)
    act_bytes = 4 * rows * (16 * D + 2 * hidden_p + 4 * S)   # rough f32 intermediates
    vmem_est = 2 * 2 * 4 * rows * D + 2 * weight_bytes + act_bytes
    vmem_limit = int(min(128 * 1024 * 1024, max(32 * 1024 * 1024, 2 * vmem_est)))

    flops = (2 * B * S * D * 3 * D                 # QKV projection
             + 4 * B * n_heads * S * S * dh        # scores + context
             + 2 * B * S * D * D                   # Wo
             + 4 * B * S * D * hidden_p)           # FF (two matmuls)
    bytes_accessed = 2 * 4 * int(x.size) + weight_bytes
    cost = pl.CostEstimate(flops=flops,
                           transcendentals=B * n_heads * S * S,
                           bytes_accessed=bytes_accessed)

    kernel = functools.partial(_encoder_layer_kernel, n_heads=n_heads)
    return pl.pallas_call(
        kernel,
        out_shape=jax.ShapeDtypeStruct((B, S, D), x.dtype),
        grid_spec=pltpu.PrefetchScalarGridSpec(
            num_scalar_prefetch=0,
            grid=(steps,),
            in_specs=in_specs,
            out_specs=out_spec,
        ),
        compiler_params=pltpu.CompilerParams(
            dimension_semantics=("parallel",),
            vmem_limit_bytes=vmem_limit),
        cost_estimate=cost,
    )(x, *weights)


def _init_params(key, d_att, hidden):
    ks = jax.random.split(key, 8)

    def lin(k, fan_in, fan_out):
        w = jax.random.normal(k, (fan_in, fan_out), jnp.float32) * (1.0 / jnp.sqrt(fan_in))
        b = jnp.zeros((1, fan_out), jnp.float32)
        return w, b

    wq, bq = lin(ks[0], d_att, d_att)
    wk, bk = lin(ks[1], d_att, d_att)
    wv, bv = lin(ks[2], d_att, d_att)
    wo, bo = lin(ks[3], d_att, d_att)
    w1, b1 = lin(ks[4], d_att, hidden)
    w2, b2 = lin(ks[5], hidden, d_att)
    return dict(
        wq=wq, bq=bq, wk=wk, bk=bk, wv=wv, bv=bv, wo=wo, bo=bo,
        g1=jnp.ones((1, d_att), jnp.float32), be1=jnp.zeros((1, d_att), jnp.float32),
        w1=w1, b1=b1, w2=w2, b2=b2,
        g2=jnp.ones((1, d_att), jnp.float32), be2=jnp.zeros((1, d_att), jnp.float32),
    )


def _reference(x, p, n_heads):
    """Pure-f32 JAX reference mirroring the PyTorch module (norm='post')."""
    B, S, D = x.shape
    dh = D // n_heads
    q = x @ p["wq"] + p["bq"][0]
    k = x @ p["wk"] + p["bk"][0]
    v = x @ p["wv"] + p["bv"][0]
    qh = q.reshape(B, S, n_heads, dh).transpose(0, 2, 1, 3)
    kh = k.reshape(B, S, n_heads, dh).transpose(0, 2, 1, 3)
    vh = v.reshape(B, S, n_heads, dh).transpose(0, 2, 1, 3)
    s = jnp.einsum("bhqd,bhkd->bhqk", qh, kh) / jnp.sqrt(jnp.float32(dh))
    pattn = jax.nn.softmax(s, axis=-1)
    o = jnp.einsum("bhqk,bhkd->bhqd", pattn, vh).transpose(0, 2, 1, 3).reshape(B, S, D)
    attn = o @ p["wo"] + p["bo"][0]

    def ln(z, g, b, eps=1e-5):
        mu = jnp.mean(z, -1, keepdims=True)
        var = jnp.mean((z - mu) ** 2, -1, keepdims=True)
        return (z - mu) * jax.lax.rsqrt(var + eps) * g + b

    y1 = ln(attn + x, p["g1"][0], p["be1"][0])
    ff = jnp.maximum(y1 @ p["w1"] + p["b1"][0], 0.0) @ p["w2"] + p["b2"][0]
    return ln(ff + y1, p["g2"][0], p["be2"][0])


if __name__ == "__main__":
    B, S, D, H, HIDDEN = 2, 8, 32, 4, 32
    key = jax.random.PRNGKey(0)
    kx, kp = jax.random.split(key)
    x = jax.random.normal(kx, (B, S, D), jnp.float32)
    params = _init_params(kp, D, HIDDEN)

    y = jax.block_until_ready(encoder_layer(x, params, n_heads=H))
    y_ref = _reference(x, params, H)

    # bf16 MXU operands (per perf review) + the approximate EUP reciprocal give
    # ~1e-2-level error vs. the pure-f32 reference; structural bugs would be O(1).
    err = float(jnp.max(jnp.abs(y - y_ref)))
    assert jnp.allclose(y, y_ref, atol=1e-1, rtol=1e-1), (
        f"mismatch vs JAX reference: max abs err = {err}")
    print("KERNEL_OK")
</pallas_src>

<mosaic_0001>
module attributes {stable_mosaic.version = 11 : i64} {
  func.func @_encoder_layer_kernel(%arg0: i32, %arg1: memref<1x8x32xf32, #tpu.memory_space<vmem>>, %arg2: memref<32x96xbf16, #tpu.memory_space<vmem>>, %arg3: memref<32x32xbf16, #tpu.memory_space<vmem>>, %arg4: memref<32x128xbf16, #tpu.memory_space<vmem>>, %arg5: memref<128x32xbf16, #tpu.memory_space<vmem>>, %arg6: memref<8x128xf32, #tpu.memory_space<vmem>>, %arg7: memref<1x8x32xf32, #tpu.memory_space<vmem>>) attributes {dimension_semantics = [#tpu.dimension_semantics<parallel>], iteration_bounds = array<i64: 2>, scalar_prefetch = 0 : i64, scratch_operands = 0 : i64, tpu.core_type = #tpu.core_type<tc>, window_params = [{transform_indices = @transform_0, window_bounds = array<i64: 1, 8, 32>}, {pipeline_mode = #tpu.pipeline_mode<synchronous>, transform_indices = @transform_1, window_bounds = array<i64: 32, 96>}, {pipeline_mode = #tpu.pipeline_mode<synchronous>, transform_indices = @transform_2, window_bounds = array<i64: 32, 32>}, {pipeline_mode = #tpu.pipeline_mode<synchronous>, transform_indices = @transform_3, window_bounds = array<i64: 32, 128>}, {pipeline_mode = #tpu.pipeline_mode<synchronous>, transform_indices = @transform_4, window_bounds = array<i64: 128, 32>}, {pipeline_mode = #tpu.pipeline_mode<synchronous>, transform_indices = @transform_5, window_bounds = array<i64: 8, 128>}, {transform_indices = @transform_6, window_bounds = array<i64: 1, 8, 32>}]} {
    %c0 = arith.constant 0 : index
    %c0_0 = arith.constant 0 : index
    %c0_1 = arith.constant 0 : index
    %0 = vector.load %arg1[%c0, %c0_0, %c0_1] : memref<1x8x32xf32, #tpu.memory_space<vmem>>, vector<1x8x32xf32>
    %1 = vector.shape_cast %0 : vector<1x8x32xf32> to vector<8x32xf32>
    %c0_2 = arith.constant 0 : index
    %c0_3 = arith.constant 0 : index
    %2 = vector.load %arg6[%c0_2, %c0_3] : memref<8x128xf32, #tpu.memory_space<vmem>>, vector<8x128xf32>
    %3 = vector.extract_strided_slice %2 {offsets = [0, 0], sizes = [1, 96], strides = [1, 1]} : vector<8x128xf32> to vector<1x96xf32>
    %4 = vector.extract_strided_slice %2 {offsets = [1, 0], sizes = [1, 32], strides = [1, 1]} : vector<8x128xf32> to vector<1x32xf32>
    %5 = vector.extract_strided_slice %2 {offsets = [2, 0], sizes = [1, 32], strides = [1, 1]} : vector<8x128xf32> to vector<1x32xf32>
    %6 = vector.extract_strided_slice %2 {offsets = [3, 0], sizes = [1, 32], strides = [1, 1]} : vector<8x128xf32> to vector<1x32xf32>
    %7 = vector.extract_strided_slice %2 {offsets = [4, 0], sizes = [1, 128], strides = [1, 1]} : vector<8x128xf32> to vector<1x128xf32>
    %8 = vector.extract_strided_slice %2 {offsets = [5, 0], sizes = [1, 32], strides = [1, 1]} : vector<8x128xf32> to vector<1x32xf32>
    %9 = vector.extract_strided_slice %2 {offsets = [6, 0], sizes = [1, 32], strides = [1, 1]} : vector<8x128xf32> to vector<1x32xf32>
    %10 = vector.extract_strided_slice %2 {offsets = [7, 0], sizes = [1, 32], strides = [1, 1]} : vector<8x128xf32> to vector<1x32xf32>
    %11 = arith.truncf %1 : vector<8x32xf32> to vector<8x32xbf16>
    %c0_4 = arith.constant 0 : index
    %c0_5 = arith.constant 0 : index
    %12 = vector.load %arg2[%c0_4, %c0_5] : memref<32x96xbf16, #tpu.memory_space<vmem>>, vector<32x96xbf16>
    %cst = arith.constant dense<0.000000e+00> : vector<8x96xf32>
    %13 = tpu.matmul %11, %12, %cst {dimension_numbers = #tpu.dot_dimension_numbers<[1], [0], [0], [1], [0, 0, 1, 1], [], []>} : vector<8x32xbf16>, vector<32x96xbf16>, vector<8x96xf32> -> vector<8x96xf32>
    %14 = vector.broadcast %3 : vector<1x96xf32> to vector<8x96xf32>
    %15 = arith.addf %13, %14 : vector<8x96xf32>
    %c0_6 = arith.constant 0 : index
    %c0_7 = arith.constant 0 : index
    %16 = vector.load %arg3[%c0_6, %c0_7] : memref<32x32xbf16, #tpu.memory_space<vmem>>, vector<32x32xbf16>
    %cst_8 = arith.constant 0.000000e+00 : f32
    %17 = vector.broadcast %cst_8 : f32 to vector<8x32xf32>
    %18 = vector.extract_strided_slice %15 {offsets = [0, 0], sizes = [8, 8], strides = [1, 1]} : vector<8x96xf32> to vector<8x8xf32>
    %19 = vector.shape_cast %18 : vector<8x8xf32> to vector<1x8x8xf32>
    %20 = vector.extract_strided_slice %15 {offsets = [0, 32], sizes = [8, 8], strides = [1, 1]} : vector<8x96xf32> to vector<8x8xf32>
    %21 = vector.shape_cast %20 : vector<8x8xf32> to vector<1x8x8xf32>
    %22 = vector.extract_strided_slice %15 {offsets = [0, 64], sizes = [8, 8], strides = [1, 1]} : vector<8x96xf32> to vector<8x8xf32>
    %23 = vector.shape_cast %22 : vector<8x8xf32> to vector<1x8x8xf32>
    %24 = arith.truncf %19 : vector<1x8x8xf32> to vector<1x8x8xbf16>
    %25 = arith.truncf %21 : vector<1x8x8xf32> to vector<1x8x8xbf16>
    "tpu.trace_start"() <{level = 10 : i32, message = "bqd,bkd->bqk"}> : () -> ()
    %cst_9 = arith.constant dense<0.000000e+00> : vector<1x8x8xf32>
    %26 = tpu.matmul %24, %25, %cst_9 {dimension_numbers = #tpu.dot_dimension_numbers<[2], [2], [1], [1], [0, 0, 0, 1, 1, 1], [0], [0]>} : vector<1x8x8xbf16>, vector<1x8x8xbf16>, vector<1x8x8xf32> -> vector<1x8x8xf32>
    "tpu.trace_stop"() : () -> ()
    %cst_10 = arith.constant dense<0xFF800000> : vector<1x8xf32>
    %27 = vector.multi_reduction <maximumf>, %26, %cst_10 [2] : vector<1x8x8xf32> to vector<1x8xf32>
    %28 = vector.shape_cast %27 : vector<1x8xf32> to vector<1x8x1xf32>
    %29 = vector.broadcast %28 : vector<1x8x1xf32> to vector<1x8x8xf32>
    %30 = arith.subf %26, %29 : vector<1x8x8xf32>
    %31 = math.exp %30 : vector<1x8x8xf32>
    %cst_11 = arith.constant dense<0.000000e+00> : vector<1x8xf32>
    %32 = vector.multi_reduction <add>, %31, %cst_11 [2] : vector<1x8x8xf32> to vector<1x8xf32>
    %33 = vector.shape_cast %32 : vector<1x8xf32> to vector<1x8x1xf32>
    %34 = tpu.reciprocal %33 {approx = true} : vector<1x8x1xf32> -> vector<1x8x1xf32>
    %35 = vector.broadcast %34 : vector<1x8x1xf32> to vector<1x8x8xf32>
    %36 = arith.mulf %31, %35 : vector<1x8x8xf32>
    %37 = arith.truncf %36 : vector<1x8x8xf32> to vector<1x8x8xbf16>
    %38 = arith.truncf %23 : vector<1x8x8xf32> to vector<1x8x8xbf16>
    "tpu.trace_start"() <{level = 10 : i32, message = "bqk,bkd->bqd"}> : () -> ()
    %cst_12 = arith.constant dense<0.000000e+00> : vector<1x8x8xf32>
    %39 = tpu.matmul %37, %38, %cst_12 {dimension_numbers = #tpu.dot_dimension_numbers<[2], [1], [1], [2], [0, 0, 0, 1, 1, 2], [0], [0]>} : vector<1x8x8xbf16>, vector<1x8x8xbf16>, vector<1x8x8xf32> -> vector<1x8x8xf32>
    "tpu.trace_stop"() : () -> ()
    %40 = vector.shape_cast %39 : vector<1x8x8xf32> to vector<8x8xf32>
    %41 = arith.truncf %40 : vector<8x8xf32> to vector<8x8xbf16>
    %42 = vector.extract_strided_slice %16 {offsets = [0, 0], sizes = [8, 32], strides = [1, 1]} : vector<32x32xbf16> to vector<8x32xbf16>
    %cst_13 = arith.constant dense<0.000000e+00> : vector<8x32xf32>
    %43 = tpu.matmul %41, %42, %cst_13 {dimension_numbers = #tpu.dot_dimension_numbers<[1], [0], [0], [1], [0, 0, 1, 1], [], []>} : vector<8x8xbf16>, vector<8x32xbf16>, vector<8x32xf32> -> vector<8x32xf32>
    %44 = arith.addf %17, %43 : vector<8x32xf32>
    %45 = vector.extract_strided_slice %15 {offsets = [0, 8], sizes = [8, 8], strides = [1, 1]} : vector<8x96xf32> to vector<8x8xf32>
    %46 = vector.shape_cast %45 : vector<8x8xf32> to vector<1x8x8xf32>
    %47 = vector.extract_strided_slice %15 {offsets = [0, 40], sizes = [8, 8], strides = [1, 1]} : vector<8x96xf32> to vector<8x8xf32>
    %48 = vector.shape_cast %47 : vector<8x8xf32> to vector<1x8x8xf32>
    %49 = vector.extract_strided_slice %15 {offsets = [0, 72], sizes = [8, 8], strides = [1, 1]} : vector<8x96xf32> to vector<8x8xf32>
    %50 = vector.shape_cast %49 : vector<8x8xf32> to vector<1x8x8xf32>
    %51 = arith.truncf %46 : vector<1x8x8xf32> to vector<1x8x8xbf16>
    %52 = arith.truncf %48 : vector<1x8x8xf32> to vector<1x8x8xbf16>
    "tpu.trace_start"() <{level = 10 : i32, message = "bqd,bkd->bqk"}> : () -> ()
    %cst_14 = arith.constant dense<0.000000e+00> : vector<1x8x8xf32>
    %53 = tpu.matmul %51, %52, %cst_14 {dimension_numbers = #tpu.dot_dimension_numbers<[2], [2], [1], [1], [0, 0, 0, 1, 1, 1], [0], [0]>} : vector<1x8x8xbf16>, vector<1x8x8xbf16>, vector<1x8x8xf32> -> vector<1x8x8xf32>
    "tpu.trace_stop"() : () -> ()
    %cst_15 = arith.constant dense<0xFF800000> : vector<1x8xf32>
    %54 = vector.multi_reduction <maximumf>, %53, %cst_15 [2] : vector<1x8x8xf32> to vector<1x8xf32>
    %55 = vector.shape_cast %54 : vector<1x8xf32> to vector<1x8x1xf32>
    %56 = vector.broadcast %55 : vector<1x8x1xf32> to vector<1x8x8xf32>
    %57 = arith.subf %53, %56 : vector<1x8x8xf32>
    %58 = math.exp %57 : vector<1x8x8xf32>
    %cst_16 = arith.constant dense<0.000000e+00> : vector<1x8xf32>
    %59 = vector.multi_reduction <add>, %58, %cst_16 [2] : vector<1x8x8xf32> to vector<1x8xf32>
    %60 = vector.shape_cast %59 : vector<1x8xf32> to vector<1x8x1xf32>
    %61 = tpu.reciprocal %60 {approx = true} : vector<1x8x1xf32> -> vector<1x8x1xf32>
    %62 = vector.broadcast %61 : vector<1x8x1xf32> to vector<1x8x8xf32>
    %63 = arith.mulf %58, %62 : vector<1x8x8xf32>
    %64 = arith.truncf %63 : vector<1x8x8xf32> to vector<1x8x8xbf16>
    %65 = arith.truncf %50 : vector<1x8x8xf32> to vector<1x8x8xbf16>
    "tpu.trace_start"() <{level = 10 : i32, message = "bqk,bkd->bqd"}> : () -> ()
    %cst_17 = arith.constant dense<0.000000e+00> : vector<1x8x8xf32>
    %66 = tpu.matmul %64, %65, %cst_17 {dimension_numbers = #tpu.dot_dimension_numbers<[2], [1], [1], [2], [0, 0, 0, 1, 1, 2], [0], [0]>} : vector<1x8x8xbf16>, vector<1x8x8xbf16>, vector<1x8x8xf32> -> vector<1x8x8xf32>
    "tpu.trace_stop"() : () -> ()
    %67 = vector.shape_cast %66 : vector<1x8x8xf32> to vector<8x8xf32>
    %68 = arith.truncf %67 : vector<8x8xf32> to vector<8x8xbf16>
    %69 = vector.extract_strided_slice %16 {offsets = [8, 0], sizes = [8, 32], strides = [1, 1]} : vector<32x32xbf16> to vector<8x32xbf16>
    %cst_18 = arith.constant dense<0.000000e+00> : vector<8x32xf32>
    %70 = tpu.matmul %68, %69, %cst_18 {dimension_numbers = #tpu.dot_dimension_numbers<[1], [0], [0], [1], [0, 0, 1, 1], [], []>} : vector<8x8xbf16>, vector<8x32xbf16>, vector<8x32xf32> -> vector<8x32xf32>
    %71 = arith.addf %44, %70 : vector<8x32xf32>
    %72 = vector.extract_strided_slice %15 {offsets = [0, 16], sizes = [8, 8], strides = [1, 1]} : vector<8x96xf32> to vector<8x8xf32>
    %73 = vector.shape_cast %72 : vector<8x8xf32> to vector<1x8x8xf32>
    %74 = vector.extract_strided_slice %15 {offsets = [0, 48], sizes = [8, 8], strides = [1, 1]} : vector<8x96xf32> to vector<8x8xf32>
    %75 = vector.shape_cast %74 : vector<8x8xf32> to vector<1x8x8xf32>
    %76 = vector.extract_strided_slice %15 {offsets = [0, 80], sizes = [8, 8], strides = [1, 1]} : vector<8x96xf32> to vector<8x8xf32>
    %77 = vector.shape_cast %76 : vector<8x8xf32> to vector<1x8x8xf32>
    %78 = arith.truncf %73 : vector<1x8x8xf32> to vector<1x8x8xbf16>
    %79 = arith.truncf %75 : vector<1x8x8xf32> to vector<1x8x8xbf16>
    "tpu.trace_start"() <{level = 10 : i32, message = "bqd,bkd->bqk"}> : () -> ()
    %cst_19 = arith.constant dense<0.000000e+00> : vector<1x8x8xf32>
    %80 = tpu.matmul %78, %79, %cst_19 {dimension_numbers = #tpu.dot_dimension_numbers<[2], [2], [1], [1], [0, 0, 0, 1, 1, 1], [0], [0]>} : vector<1x8x8xbf16>, vector<1x8x8xbf16>, vector<1x8x8xf32> -> vector<1x8x8xf32>
    "tpu.trace_stop"() : () -> ()
    %cst_20 = arith.constant dense<0xFF800000> : vector<1x8xf32>
    %81 = vector.multi_reduction <maximumf>, %80, %cst_20 [2] : vector<1x8x8xf32> to vector<1x8xf32>
    %82 = vector.shape_cast %81 : vector<1x8xf32> to vector<1x8x1xf32>
    %83 = vector.broadcast %82 : vector<1x8x1xf32> to vector<1x8x8xf32>
    %84 = arith.subf %80, %83 : vector<1x8x8xf32>
    %85 = math.exp %84 : vector<1x8x8xf32>
    %cst_21 = arith.constant dense<0.000000e+00> : vector<1x8xf32>
    %86 = vector.multi_reduction <add>, %85, %cst_21 [2] : vector<1x8x8xf32> to vector<1x8xf32>
    %87 = vector.shape_cast %86 : vector<1x8xf32> to vector<1x8x1xf32>
    %88 = tpu.reciprocal %87 {approx = true} : vector<1x8x1xf32> -> vector<1x8x1xf32>
    %89 = vector.broadcast %88 : vector<1x8x1xf32> to vector<1x8x8xf32>
    %90 = arith.mulf %85, %89 : vector<1x8x8xf32>
    %91 = arith.truncf %90 : vector<1x8x8xf32> to vector<1x8x8xbf16>
    %92 = arith.truncf %77 : vector<1x8x8xf32> to vector<1x8x8xbf16>
    "tpu.trace_start"() <{level = 10 : i32, message = "bqk,bkd->bqd"}> : () -> ()
    %cst_22 = arith.constant dense<0.000000e+00> : vector<1x8x8xf32>
    %93 = tpu.matmul %91, %92, %cst_22 {dimension_numbers = #tpu.dot_dimension_numbers<[2], [1], [1], [2], [0, 0, 0, 1, 1, 2], [0], [0]>} : vector<1x8x8xbf16>, vector<1x8x8xbf16>, vector<1x8x8xf32> -> vector<1x8x8xf32>
    "tpu.trace_stop"() : () -> ()
    %94 = vector.shape_cast %93 : vector<1x8x8xf32> to vector<8x8xf32>
    %95 = arith.truncf %94 : vector<8x8xf32> to vector<8x8xbf16>
    %96 = vector.extract_strided_slice %16 {offsets = [16, 0], sizes = [8, 32], strides = [1, 1]} : vector<32x32xbf16> to vector<8x32xbf16>
    %cst_23 = arith.constant dense<0.000000e+00> : vector<8x32xf32>
    %97 = tpu.matmul %95, %96, %cst_23 {dimension_numbers = #tpu.dot_dimension_numbers<[1], [0], [0], [1], [0, 0, 1, 1], [], []>} : vector<8x8xbf16>, vector<8x32xbf16>, vector<8x32xf32> -> vector<8x32xf32>
    %98 = arith.addf %71, %97 : vector<8x32xf32>
    %99 = vector.extract_strided_slice %15 {offsets = [0, 24], sizes = [8, 8], strides = [1, 1]} : vector<8x96xf32> to vector<8x8xf32>
    %100 = vector.shape_cast %99 : vector<8x8xf32> to vector<1x8x8xf32>
    %101 = vector.extract_strided_slice %15 {offsets = [0, 56], sizes = [8, 8], strides = [1, 1]} : vector<8x96xf32> to vector<8x8xf32>
    %102 = vector.shape_cast %101 : vector<8x8xf32> to vector<1x8x8xf32>
    %103 = vector.extract_strided_slice %15 {offsets = [0, 88], sizes = [8, 8], strides = [1, 1]} : vector<8x96xf32> to vector<8x8xf32>
    %104 = vector.shape_cast %103 : vector<8x8xf32> to vector<1x8x8xf32>
    %105 = arith.truncf %100 : vector<1x8x8xf32> to vector<1x8x8xbf16>
    %106 = arith.truncf %102 : vector<1x8x8xf32> to vector<1x8x8xbf16>
    "tpu.trace_start"() <{level = 10 : i32, message = "bqd,bkd->bqk"}> : () -> ()
    %cst_24 = arith.constant dense<0.000000e+00> : vector<1x8x8xf32>
    %107 = tpu.matmul %105, %106, %cst_24 {dimension_numbers = #tpu.dot_dimension_numbers<[2], [2], [1], [1], [0, 0, 0, 1, 1, 1], [0], [0]>} : vector<1x8x8xbf16>, vector<1x8x8xbf16>, vector<1x8x8xf32> -> vector<1x8x8xf32>
    "tpu.trace_stop"() : () -> ()
    %cst_25 = arith.constant dense<0xFF800000> : vector<1x8xf32>
    %108 = vector.multi_reduction <maximumf>, %107, %cst_25 [2] : vector<1x8x8xf32> to vector<1x8xf32>
    %109 = vector.shape_cast %108 : vector<1x8xf32> to vector<1x8x1xf32>
    %110 = vector.broadcast %109 : vector<1x8x1xf32> to vector<1x8x8xf32>
    %111 = arith.subf %107, %110 : vector<1x8x8xf32>
    %112 = math.exp %111 : vector<1x8x8xf32>
    %cst_26 = arith.constant dense<0.000000e+00> : vector<1x8xf32>
    %113 = vector.multi_reduction <add>, %112, %cst_26 [2] : vector<1x8x8xf32> to vector<1x8xf32>
    %114 = vector.shape_cast %113 : vector<1x8xf32> to vector<1x8x1xf32>
    %115 = tpu.reciprocal %114 {approx = true} : vector<1x8x1xf32> -> vector<1x8x1xf32>
    %116 = vector.broadcast %115 : vector<1x8x1xf32> to vector<1x8x8xf32>
    %117 = arith.mulf %112, %116 : vector<1x8x8xf32>
    %118 = arith.truncf %117 : vector<1x8x8xf32> to vector<1x8x8xbf16>
    %119 = arith.truncf %104 : vector<1x8x8xf32> to vector<1x8x8xbf16>
    "tpu.trace_start"() <{level = 10 : i32, message = "bqk,bkd->bqd"}> : () -> ()
    %cst_27 = arith.constant dense<0.000000e+00> : vector<1x8x8xf32>
    %120 = tpu.matmul %118, %119, %cst_27 {dimension_numbers = #tpu.dot_dimension_numbers<[2], [1], [1], [2], [0, 0, 0, 1, 1, 2], [0], [0]>} : vector<1x8x8xbf16>, vector<1x8x8xbf16>, vector<1x8x8xf32> -> vector<1x8x8xf32>
    "tpu.trace_stop"() : () -> ()
    %121 = vector.shape_cast %120 : vector<1x8x8xf32> to vector<8x8xf32>
    %122 = arith.truncf %121 : vector<8x8xf32> to vector<8x8xbf16>
    %123 = vector.extract_strided_slice %16 {offsets = [24, 0], sizes = [8, 32], strides = [1, 1]} : vector<32x32xbf16> to vector<8x32xbf16>
    %cst_28 = arith.constant dense<0.000000e+00> : vector<8x32xf32>
    %124 = tpu.matmul %122, %123, %cst_28 {dimension_numbers = #tpu.dot_dimension_numbers<[1], [0], [0], [1], [0, 0, 1, 1], [], []>} : vector<8x8xbf16>, vector<8x32xbf16>, vector<8x32xf32> -> vector<8x32xf32>
    %125 = arith.addf %98, %124 : vector<8x32xf32>
    %126 = vector.broadcast %4 : vector<1x32xf32> to vector<8x32xf32>
    %127 = arith.addf %125, %126 : vector<8x32xf32>
    %128 = arith.addf %127, %1 : vector<8x32xf32>
    %cst_29 = arith.constant dense<0.000000e+00> : vector<8xf32>
    %129 = vector.multi_reduction <add>, %128, %cst_29 [1] : vector<8x32xf32> to vector<8xf32>
    %130 = vector.shape_cast %129 : vector<8xf32> to vector<8x1xf32>
    %cst_30 = arith.constant 3.200000e+01 : f32
    %131 = vector.broadcast %cst_30 : f32 to vector<8x1xf32>
    %132 = arith.divf %130, %131 : vector<8x1xf32>
    %133 = vector.broadcast %132 : vector<8x1xf32> to vector<8x32xf32>
    %134 = arith.subf %128, %133 : vector<8x32xf32>
    %135 = arith.mulf %134, %134 : vector<8x32xf32>
    %cst_31 = arith.constant dense<0.000000e+00> : vector<8xf32>
    %136 = vector.multi_reduction <add>, %135, %cst_31 [1] : vector<8x32xf32> to vector<8xf32>
    %137 = vector.shape_cast %136 : vector<8xf32> to vector<8x1xf32>
    %cst_32 = arith.constant 3.200000e+01 : f32
    %138 = vector.broadcast %cst_32 : f32 to vector<8x1xf32>
    %139 = arith.divf %137, %138 : vector<8x1xf32>
    %140 = vector.broadcast %132 : vector<8x1xf32> to vector<8x32xf32>
    %141 = arith.subf %128, %140 : vector<8x32xf32>
    %cst_33 = arith.constant 9.99999974E-6 : f32
    %142 = vector.broadcast %cst_33 : f32 to vector<8x1xf32>
    %143 = arith.addf %139, %142 : vector<8x1xf32>
    %144 = math.rsqrt %143 : vector<8x1xf32>
    %145 = vector.broadcast %144 : vector<8x1xf32> to vector<8x32xf32>
    %146 = arith.mulf %141, %145 : vector<8x32xf32>
    %147 = vector.broadcast %5 : vector<1x32xf32> to vector<8x32xf32>
    %148 = arith.mulf %146, %147 : vector<8x32xf32>
    %149 = vector.broadcast %6 : vector<1x32xf32> to vector<8x32xf32>
    %150 = arith.addf %148, %149 : vector<8x32xf32>
    %151 = arith.truncf %150 : vector<8x32xf32> to vector<8x32xbf16>
    %c0_34 = arith.constant 0 : index
    %c0_35 = arith.constant 0 : index
    %152 = vector.load %arg4[%c0_34, %c0_35] : memref<32x128xbf16, #tpu.memory_space<vmem>>, vector<32x128xbf16>
    %cst_36 = arith.constant dense<0.000000e+00> : vector<8x128xf32>
    %153 = tpu.matmul %151, %152, %cst_36 {dimension_numbers = #tpu.dot_dimension_numbers<[1], [0], [0], [1], [0, 0, 1, 1], [], []>} : vector<8x32xbf16>, vector<32x128xbf16>, vector<8x128xf32> -> vector<8x128xf32>
    %154 = vector.broadcast %7 : vector<1x128xf32> to vector<8x128xf32>
    %155 = arith.addf %153, %154 : vector<8x128xf32>
    %cst_37 = arith.constant 0.000000e+00 : f32
    %156 = vector.broadcast %cst_37 : f32 to vector<8x128xf32>
    %157 = arith.maximumf %155, %156 : vector<8x128xf32>
    %158 = arith.truncf %157 : vector<8x128xf32> to vector<8x128xbf16>
    %c0_38 = arith.constant 0 : index
    %c0_39 = arith.constant 0 : index
    %159 = vector.load %arg5[%c0_38, %c0_39] : memref<128x32xbf16, #tpu.memory_space<vmem>>, vector<128x32xbf16>
    %cst_40 = arith.constant dense<0.000000e+00> : vector<8x32xf32>
    %160 = tpu.matmul %158, %159, %cst_40 {dimension_numbers = #tpu.dot_dimension_numbers<[1], [0], [0], [1], [0, 0, 1, 1], [], []>} : vector<8x128xbf16>, vector<128x32xbf16>, vector<8x32xf32> -> vector<8x32xf32>
    %161 = vector.broadcast %8 : vector<1x32xf32> to vector<8x32xf32>
    %162 = arith.addf %160, %161 : vector<8x32xf32>
    %163 = arith.addf %162, %150 : vector<8x32xf32>
    %cst_41 = arith.constant dense<0.000000e+00> : vector<8xf32>
    %164 = vector.multi_reduction <add>, %163, %cst_41 [1] : vector<8x32xf32> to vector<8xf32>
    %165 = vector.shape_cast %164 : vector<8xf32> to vector<8x1xf32>
    %cst_42 = arith.constant 3.200000e+01 : f32
    %166 = vector.broadcast %cst_42 : f32 to vector<8x1xf32>
    %167 = arith.divf %165, %166 : vector<8x1xf32>
    %168 = vector.broadcast %167 : vector<8x1xf32> to vector<8x32xf32>
    %169 = arith.subf %163, %168 : vector<8x32xf32>
    %170 = arith.mulf %169, %169 : vector<8x32xf32>
    %cst_43 = arith.constant dense<0.000000e+00> : vector<8xf32>
    %171 = vector.multi_reduction <add>, %170, %cst_43 [1] : vector<8x32xf32> to vector<8xf32>
    %172 = vector.shape_cast %171 : vector<8xf32> to vector<8x1xf32>
    %cst_44 = arith.constant 3.200000e+01 : f32
    %173 = vector.broadcast %cst_44 : f32 to vector<8x1xf32>
    %174 = arith.divf %172, %173 : vector<8x1xf32>
    %175 = vector.broadcast %167 : vector<8x1xf32> to vector<8x32xf32>
    %176 = arith.subf %163, %175 : vector<8x32xf32>
    %cst_45 = arith.constant 9.99999974E-6 : f32
    %177 = vector.broadcast %cst_45 : f32 to vector<8x1xf32>
    %178 = arith.addf %174, %177 : vector<8x1xf32>
    %179 = math.rsqrt %178 : vector<8x1xf32>
    %180 = vector.broadcast %179 : vector<8x1xf32> to vector<8x32xf32>
    %181 = arith.mulf %176, %180 : vector<8x32xf32>
    %182 = vector.broadcast %9 : vector<1x32xf32> to vector<8x32xf32>
    %183 = arith.mulf %181, %182 : vector<8x32xf32>
    %184 = vector.broadcast %10 : vector<1x32xf32> to vector<8x32xf32>
    %185 = arith.addf %183, %184 : vector<8x32xf32>
    %186 = vector.shape_cast %185 : vector<8x32xf32> to vector<1x8x32xf32>
    %c0_46 = arith.constant 0 : index
    %c0_47 = arith.constant 0 : index
    %c0_48 = arith.constant 0 : index
    %187 = vector.load %arg7[%c0_46, %c0_47, %c0_48] : memref<1x8x32xf32, #tpu.memory_space<vmem>>, vector<1x8x32xf32>
    tpu.vector_store %arg7[%c0_46, %c0_47, %c0_48], %186 {strides = array<i32>} : memref<1x8x32xf32, #tpu.memory_space<vmem>>, vector<1x8x32xf32>,
    return
  }
  func.func @transform_0(%arg0: i32) -> (i32, i32, i32) {
    %c0_i32 = arith.constant 0 : i32
    %c0_i32_0 = arith.constant 0 : i32
    %c0_i32_1 = arith.constant 0 : i32
    return %arg0, %c0_i32, %c0_i32_0 : i32, i32, i32
  }
  func.func @transform_1(%arg0: i32) -> (i32, i32) {
    %c0_i32 = arith.constant 0 : i32
    %c0_i32_0 = arith.constant 0 : i32
    %c0_i32_1 = arith.constant 0 : i32
    return %c0_i32, %c0_i32_0 : i32, i32
  }
  func.func @transform_2(%arg0: i32) -> (i32, i32) {
    %c0_i32 = arith.constant 0 : i32
    %c0_i32_0 = arith.constant 0 : i32
    %c0_i32_1 = arith.constant 0 : i32
    return %c0_i32, %c0_i32_0 : i32, i32
  }
  func.func @transform_3(%arg0: i32) -> (i32, i32) {
    %c0_i32 = arith.constant 0 : i32
    %c0_i32_0 = arith.constant 0 : i32
    %c0_i32_1 = arith.constant 0 : i32
    return %c0_i32, %c0_i32_0 : i32, i32
  }
  func.func @transform_4(%arg0: i32) -> (i32, i32) {
    %c0_i32 = arith.constant 0 : i32
    %c0_i32_0 = arith.constant 0 : i32
    %c0_i32_1 = arith.constant 0 : i32
    return %c0_i32, %c0_i32_0 : i32, i32
  }
  func.func @transform_5(%arg0: i32) -> (i32, i32) {
    %c0_i32 = arith.constant 0 : i32
    %c0_i32_0 = arith.constant 0 : i32
    %c0_i32_1 = arith.constant 0 : i32
    return %c0_i32, %c0_i32_0 : i32, i32
  }
  func.func @transform_6(%arg0: i32) -> (i32, i32, i32) {
    %c0_i32 = arith.constant 0 : i32
    %c0_i32_0 = arith.constant 0 : i32
    %c0_i32_1 = arith.constant 0 : i32
    return %arg0, %c0_i32, %c0_i32_0 : i32, i32, i32
  }
}

</mosaic_0001>

<llo_original>
// kernel: tpu_custom_call.1
$region0: #{tpu_custom_call.1}
  #allocation0 [shape = 'u32[]', space=smem, size = 0x4, offset = 0x4, fixed_abs, tag = 'smem constant byte address 0x4 - core index']
  #allocation1 [shape = 'u32[144,128]{1,0:T(1,128)}', space=vmem, size = 0x12000, scoped, tag = 'internal scratch']
  %s0 = inlined_call_operand.vmem [shape: f32[2,8,32], index: 0, kind: input, shape index: {}]
  %s1 = inlined_call_operand.vmem [shape: bf16[32,96], index: 1, kind: input, shape index: {}]
  %s2 = inlined_call_operand.vmem [shape: bf16[32,32], index: 2, kind: input, shape index: {}]
  %s3 = inlined_call_operand.vmem [shape: bf16[32,128], index: 3, kind: input, shape index: {}]
  %s4 = inlined_call_operand.vmem [shape: bf16[128,32], index: 4, kind: input, shape index: {}]
  %s5 = inlined_call_operand.vmem [shape: f32[8,128], index: 5, kind: input, shape index: {}]
  %s6 = inlined_call_operand.hbm [shape: f32[2,8,32], index: 6, kind: output, shape index: {}]
  %s7 = sld [smem:[#allocation0]]
  $region57: #{tpu_custom_call.1} parent=0
    _
  %s9 = ssub.s32 1, %s7
  %s10 = scalar_select 0, %s9, %s7
  $region1: #{tpu_custom_call.1} parent=0
    #allocation2 [shape = 'u8[8192]{0}', space=vmem, size = 0x2000, scoped, tag = 'output window, operand 0']
    #allocation3 [shape = 's32[2]{0}', space=sflag, size = 0x8, scoped, tag = 'scoped memory for tpu_custom_call.1']
    %11 = vsyncpa [#allocation3], 0
    %s12 = scalar_lea.sflag [#allocation3], 1
    %13 = vsyncpa %s12, 0
    loop: start=0, step=1, limit=4
    $region2: #{tpu_custom_call.1} parent=1 // loop_pre_header
      _
    $region3: #{tpu_custom_call.1} parent=1 // loop_header
      %s15 = sphi 0, %s19
      %p16 = scmp.ge.s32.totalorder %s15, 4
      %s25 = sphi 0, %s27
      %s28 = sphi 0, %s25
      %s29 = sphi 0, %s28
      %s45 = sphi 0, %s29
      %s49 = sphi 0, %s49
      %s51 = sphi 0, %s49
      %s52 = sphi 0, %s51
      %s66 = sphi 0, %s52
      %s70 = sphi 0, %s70
      %s72 = sphi 0, %s70
      %s73 = sphi 0, %s72
      %s87 = sphi 0, %s73
      %s91 = sphi 0, %s91
      %s93 = sphi 0, %s91
      %s94 = sphi 0, %s93
      %s108 = sphi 0, %s94
      %s112 = sphi 0, %s112
      %s114 = sphi 0, %s112
      %s115 = sphi 0, %s114
      %s129 = sphi 0, %s115
      %s133 = sphi 0, %s133
      %s135 = sphi 0, %s133
      %s136 = sphi 0, %s135
      %s150 = sphi 0, %s136
      %s156 = sphi 0, %s158
      %s159 = sphi 0, %s156
      %s160 = sphi 0, %s159
      %s176 = sphi 0, %s160
    $region4: #{tpu_custom_call.1} parent=1 // loop_header_branch
      %18 = sbr.rel (%p16) target = $region8
    $region5: #{tpu_custom_call.1} parent=1 // loop_body
      %s20 = ssub.s32 %s15, 1
      %s21 = ssub.s32 %s15, 2
      %s22 = sadd.s32 %s15, 1
      %s23 = ssub.s32 %s15, %s22
      %p24 = scmp.eq.s32.totalorder %s23, 0
      %s26 = sadd.s32 %s25, 1
      %s27 = scalar_select %p24, %s25, %s26
      %p30 = pneg %p24
      %p31 = scmp.eq.s32.totalorder %s15, 1
      %p32 = por %p30, %p31
      %p33 = scmp.ne.s32.totalorder %s25, %s28
      %p34 = scmp.eq.s32.totalorder %s15, 0
      %p35 = por %p33, %p34
      %p36 = scmp.ne.s32.totalorder %s25, %s28
      %p37 = scmp.eq.s32.totalorder %s20, 1
      %p38 = por %p36, %p37
      %p39 = scmp.ne.s32.totalorder %s28, %s29
      %p40 = scmp.eq.s32.totalorder %s20, 0
      %p41 = por %p39, %p40
      %p42 = scmp.ne.s32.totalorder %s28, %s29
      %p43 = scmp.eq.s32.totalorder %s21, 1
      %p44 = por %p42, %p43
      %p46 = scmp.ne.s32.totalorder %s29, %s45
      %p47 = scmp.eq.s32.totalorder %s21, 0
      %p48 = por %p46, %p47
      %s50 = sadd.s32 %s49, 1
      %p53 = scmp.eq.s32.totalorder %s15, 1
      %p54 = scmp.ne.s32.totalorder %s49, %s51
      %p55 = scmp.eq.s32.totalorder %s15, 0
      %p56 = por %p54, %p55
      %p57 = scmp.ne.s32.totalorder %s49, %s51
      %p58 = scmp.eq.s32.totalorder %s20, 1
      %p59 = por %p57, %p58
      %p60 = scmp.ne.s32.totalorder %s51, %s52
      %p61 = scmp.eq.s32.totalorder %s20, 0
      %p62 = por %p60, %p61
      %p63 = scmp.ne.s32.totalorder %s51, %s52
      %p64 = scmp.eq.s32.totalorder %s21, 1
      %p65 = por %p63, %p64
      %p67 = scmp.ne.s32.totalorder %s52, %s66
      %p68 = scmp.eq.s32.totalorder %s21, 0
      %p69 = por %p67, %p68
      %s71 = sadd.s32 %s70, 1
      %p74 = scmp.eq.s32.totalorder %s15, 1
      %p75 = scmp.ne.s32.totalorder %s70, %s72
      %p76 = scmp.eq.s32.totalorder %s15, 0
      %p77 = por %p75, %p76
      %p78 = scmp.ne.s32.totalorder %s70, %s72
      %p79 = scmp.eq.s32.totalorder %s20, 1
      %p80 = por %p78, %p79
      %p81 = scmp.ne.s32.totalorder %s72, %s73
      %p82 = scmp.eq.s32.totalorder %s20, 0
      %p83 = por %p81, %p82
      %p84 = scmp.ne.s32.totalorder %s72, %s73
      %p85 = scmp.eq.s32.totalorder %s21, 1
      %p86 = por %p84, %p85
      %p88 = scmp.ne.s32.totalorder %s73, %s87
      %p89 = scmp.eq.s32.totalorder %s21, 0
      %p90 = por %p88, %p89
      %s92 = sadd.s32 %s91, 1
      %p95 = scmp.eq.s32.totalorder %s15, 1
      %p96 = scmp.ne.s32.totalorder %s91, %s93
      %p97 = scmp.eq.s32.totalorder %s15, 0
      %p98 = por %p96, %p97
      %p99 = scmp.ne.s32.totalorder %s91, %s93
      %p100 = scmp.eq.s32.totalorder %s20, 1
      %p101 = por %p99, %p100
      %p102 = scmp.ne.s32.totalorder %s93, %s94
      %p103 = scmp.eq.s32.totalorder %s20, 0
      %p104 = por %p102, %p103
      %p105 = scmp.ne.s32.totalorder %s93, %s94
      %p106 = scmp.eq.s32.totalorder %s21, 1
      %p107 = por %p105, %p106
      %p109 = scmp.ne.s32.totalorder %s94, %s108
      %p110 = scmp.eq.s32.totalorder %s21, 0
      %p111 = por %p109, %p110
      %s113 = sadd.s32 %s112, 1
      %p116 = scmp.eq.s32.totalorder %s15, 1
      %p117 = scmp.ne.s32.totalorder %s112, %s114
      %p118 = scmp.eq.s32.totalorder %s15, 0
      %p119 = por %p117, %p118
      %p120 = scmp.ne.s32.totalorder %s112, %s114
      %p121 = scmp.eq.s32.totalorder %s20, 1
      %p122 = por %p120, %p121
      %p123 = scmp.ne.s32.totalorder %s114, %s115
      %p124 = scmp.eq.s32.totalorder %s20, 0
      %p125 = por %p123, %p124
      %p126 = scmp.ne.s32.totalorder %s114, %s115
      %p127 = scmp.eq.s32.totalorder %s21, 1
      %p128 = por %p126, %p127
      %p130 = scmp.ne.s32.totalorder %s115, %s129
      %p131 = scmp.eq.s32.totalorder %s21, 0
      %p132 = por %p130, %p131
      %s134 = sadd.s32 %s133, 1
      %p137 = scmp.eq.s32.totalorder %s15, 1
      %p138 = scmp.ne.s32.totalorder %s133, %s135
      %p139 = scmp.eq.s32.totalorder %s15, 0
      %p140 = por %p138, %p139
      %p141 = scmp.ne.s32.totalorder %s133, %s135
      %p142 = scmp.eq.s32.totalorder %s20, 1
      %p143 = por %p141, %p142
      %p144 = scmp.ne.s32.totalorder %s135, %s136
      %p145 = scmp.eq.s32.totalorder %s20, 0
      %p146 = por %p144, %p145
      %p147 = scmp.ne.s32.totalorder %s135, %s136
      %p148 = scmp.eq.s32.totalorder %s21, 1
      %p149 = por %p147, %p148
      %p151 = scmp.ne.s32.totalorder %s136, %s150
      %p152 = scmp.eq.s32.totalorder %s21, 0
      %p153 = por %p151, %p152
      %s154 = ssub.s32 %s15, %s22
      %p155 = scmp.eq.s32.totalorder %s154, 0
      %s157 = sadd.s32 %s156, 1
      %s158 = scalar_select %p155, %s156, %s157
      %p161 = pneg %p155
      %p162 = scmp.eq.s32.totalorder %s15, 1
      %p163 = por %p161, %p162
      %p164 = scmp.ne.s32.totalorder %s156, %s159
      %p165 = scmp.eq.s32.totalorder %s15, 0
      %p166 = por %p164, %p165
      %p167 = scmp.ne.s32.totalorder %s156, %s159
      %p168 = scmp.eq.s32.totalorder %s20, 1
      %p169 = por %p167, %p168
      %p170 = scmp.ne.s32.totalorder %s159, %s160
      %p171 = scmp.eq.s32.totalorder %s20, 0
      %p172 = por %p170, %p171
      %p173 = scmp.ne.s32.totalorder %s159, %s160
      %p174 = scmp.eq.s32.totalorder %s21, 1
      %p175 = por %p173, %p174
      %p177 = scmp.ne.s32.totalorder %s160, %s176
      %p178 = scmp.eq.s32.totalorder %s21, 0
      %p179 = por %p177, %p178
      %p180 = scmp.le.s32.totalorder 1, %s15
      %p181 = scmp.lt.s32.totalorder %s15, 3
      %p182 = pnand %p180, %p181
      %p183 = pneg %p182
      // Predicated region
      $region9: #{tpu_custom_call.1} parent=5 // pred_check
        _
      $region10: #{tpu_custom_call.1} parent=5 // pred_check_branch
        %185 = sbr.rel (%p182) target = $region12
      $region11: #{tpu_custom_call.1} parent=5 // pred_region
        %s186 = ssub.s32 %s15, 1
        // Predicated region
        $region13: #{tpu_custom_call.1} parent=11 // pred_check
          %p187 = pneg %p62
        $region14: #{tpu_custom_call.1} parent=11 // pred_check_branch
          %189 = sbr.rel (%p187) target = $region16
        $region15: #{tpu_custom_call.1} parent=11 // pred_region
          _
        $region16: #{tpu_custom_call.1} parent=11 // pred_fallthru
          _
        // Predicated region
        $region17: #{tpu_custom_call.1} parent=11 // pred_check
          %p190 = pneg %p83
        $region18: #{tpu_custom_call.1} parent=11 // pred_check_branch
          %192 = sbr.rel (%p190) target = $region20
        $region19: #{tpu_custom_call.1} parent=11 // pred_region
          _
        $region20: #{tpu_custom_call.1} parent=11 // pred_fallthru
          _
        // Predicated region
        $region21: #{tpu_custom_call.1} parent=11 // pred_check
          %p193 = pneg %p104
        $region22: #{tpu_custom_call.1} parent=11 // pred_check_branch
          %195 = sbr.rel (%p193) target = $region24
        $region23: #{tpu_custom_call.1} parent=11 // pred_region
          _
        $region24: #{tpu_custom_call.1} parent=11 // pred_fallthru
          _
        // Predicated region
        $region25: #{tpu_custom_call.1} parent=11 // pred_check
          %p196 = pneg %p125
        $region26: #{tpu_custom_call.1} parent=11 // pred_check_branch
          %198 = sbr.rel (%p196) target = $region28
        $region27: #{tpu_custom_call.1} parent=11 // pred_region
          _
        $region28: #{tpu_custom_call.1} parent=11 // pred_fallthru
          _
        // Predicated region
        $region29: #{tpu_custom_call.1} parent=11 // pred_check
          %p199 = pneg %p146
        $region30: #{tpu_custom_call.1} parent=11 // pred_check_branch
          %201 = sbr.rel (%p199) target = $region32
        $region31: #{tpu_custom_call.1} parent=11 // pred_region
          _
        $region32: #{tpu_custom_call.1} parent=11 // pred_fallthru
          _
      $region12: #{tpu_custom_call.1} parent=5 // pred_fallthru
        _
      %p202 = scmp.lt.s32.totalorder %s15, 2
      // Predicated region
      $region33: #{tpu_custom_call.1} parent=5 // pred_check
        %p203 = pneg %p202
      $region34: #{tpu_custom_call.1} parent=5 // pred_check_branch
        %205 = sbr.rel (%p203) target = $region36
      $region35: #{tpu_custom_call.1} parent=5 // pred_region
        // Predicated region
        $region37: #{tpu_custom_call.1} parent=35 // pred_check
          %p206 = pneg %p35
        $region38: #{tpu_custom_call.1} parent=35 // pred_check_branch
          %208 = sbr.rel (%p206) target = $region40
        $region39: #{tpu_custom_call.1} parent=35 // pred_region
          %p209 = scmp.lt.s32.totalorder %s15, 1
          %s210 = scalar_select %p209, %s15, 1
          %s211 = smul.addr %s210, 8
          %s212 = scalar_lea.vmem %s0, %s211
        $region40: #{tpu_custom_call.1} parent=35 // pred_fallthru
          _
      $region36: #{tpu_custom_call.1} parent=5 // pred_fallthru
        _
      %p213 = scmp.le.s32.totalorder 1, %s15
      %p214 = scmp.lt.s32.totalorder %s15, 3
      %p215 = pnand %p213, %p214
      %p216 = pneg %p215
      // Predicated region
      $region41: #{tpu_custom_call.1} parent=5 // pred_check
        _
      $region42: #{tpu_custom_call.1} parent=5 // pred_check_branch
        %218 = sbr.rel (%p215) target = $region44
      $region43: #{tpu_custom_call.1} parent=5 // pred_region
        %s219 = ssub.s32 %s15, 1
        %p220 = scmp.lt.s32.totalorder %s20, 1
        %s221 = scalar_select %p220, %s20, 1
        %s222 = smul.addr %s221, 8
        %s223 = scalar_lea.vmem %s0, %s222
        %p224 = pneg %p41
        %p225 = pneg %p38
        %p226 = pneg %p62
        %p227 = pneg %p59
        %p228 = pneg %p83
        %p229 = pneg %p80
        %p230 = pneg %p104
        %p231 = pneg %p101
        %p232 = pneg %p125
        %p233 = pneg %p122
        %p234 = pneg %p146
        %p235 = pneg %p143
        %p236 = pneg %p172
        %p237 = pneg %p169
        %s238 = sand.u32 %s159, 1
        %s239 = scalar_lea.sflag [#allocation3], %s238
        %s240 = sand.u32 %s159, 1
        %s241 = smul.addr %s240, 8
        %s242 = scalar_lea.vmem [#allocation2], %s241
        %p243 = scmp.lt.s32.totalorder %s20, 1
        %s244 = scalar_select %p243, %s20, 1
        %s245 = smul.addr %s244, 8
        %s246 = scalar_lea.vmem %s0, %s245
        %v248 = vld [vmem:[%s246] sm:$0xff]
        %v249 = vld [vmem:[%s5] sm:$0xff]
        %v250 = vpack.c.bf16 %v248, %v248
        %v251 = vld [vmem:[%s1] sm:$0xf]
        %v252 = vld [vmem:[%s1 + $0x4] sm:$0xf]
        %v253 = vld [vmem:[%s1 + $0x8] sm:$0xf]
        %v254 = vld [vmem:[%s1 + $0xc] sm:$0xf]
        %v255 = vlaneseq
        %v256 = vshrl.u32 %v255, 7
        %v257 = vsub.s32 0, %v256
        %v258 = vrot.slane %v249, %v257
        %v263 = vunpack.c.l.b16 %v251
        %v264 = vunpack.c.l.b16 %v252
        %v265 = vunpack.c.l.b16 %v253
        %v266 = vunpack.c.l.b16 %v254
        %v267 = vpack.c.b16 %v264, %v263
        %v268 = vpack.c.b16 %v266, %v265
        %vm271 = vcmask 261120
        %v273 = vsel %vm271, %v250, 0
        %275 = vmatprep.subr.bf16.mxu0 0
        %276 = vmatpush1.bf16.msra.mxu0 %v267
        %277 = vmatprep.subr.bf16.mxu0 0
        %278 = vmatpush1.bf16.msra.mxu0 %v268
        %279 = vmatprep.subr.bf16.mxu0 0
        %280 = vmatpush1.bf16.msra.mxu0 0
        %281 = vmatprep.subr.bf16.mxu0 0
        %282 = vmatpush1.bf16.msra.mxu0 0
        %283 = vmatprep.subr.bf16.mxu0 0
        %284 = vmatpush1.bf16.msra.mxu0 0
        %285 = vmatprep.subr.bf16.mxu0 0
        %286 = vmatpush1.bf16.msra.mxu0 0
        %287 = vmatprep.subr.bf16.mxu0 0
        %288 = vmatpush1.bf16.msra.mxu0 0
        %289 = vmatprep.subr.bf16.mxu0 0
        %290 = vmatpush1.bf16.msra.mxu0 0
        %291 = vmatprep.subr.bf16.mxu0 0
        %292 = vmatpush1.bf16.msra.mxu0 0
        %293 = vmatprep.subr.bf16.mxu0 0
        %294 = vmatpush1.bf16.msra.mxu0 0
        %295 = vmatprep.subr.bf16.mxu0 0
        %296 = vmatpush1.bf16.msra.mxu0 0
        %297 = vmatprep.subr.bf16.mxu0 0
        %298 = vmatpush1.bf16.msra.mxu0 0
        %299 = vmatprep.subr.bf16.mxu0 0
        %300 = vmatpush1.bf16.msra.mxu0 0
        %301 = vmatprep.subr.bf16.mxu0 0
        %302 = vmatpush1.bf16.msra.mxu0 0
        %303 = vmatprep.subr.bf16.mxu0 0
        %304 = vmatpush1.bf16.msra.mxu0 0
        %305 = vmatprep.subr.bf16.mxu0 0
        %306 = vmatpush1.bf16.msra.mxu0 0
        %307 = vmatprep.mubr.bf16.mxu0 0
        %308 = vmatmul.mubr.bf16.gmra.mrb[0].mxu0 %v273
        %v309 = vpop.f32.mrb[0].mxu0
        %v310 = vadd.f32 %v258, %v309
        %v311 = vpop.f32.mrb[0].mxu0
        %v312 = vpop.f32.mrb[0].mxu0
        %v313 = vpop.f32.mrb[0].mxu0
        %314 = vdwg.mxu0
        %v315 = vld [vmem:[%s2] sm:$0xf]
        %v316 = vld [vmem:[%s2 + $0x4] sm:$0xf]
        %v317 = vld [vmem:[%s2 + $0x8] sm:$0xf]
        %v318 = vld [vmem:[%s2 + $0xc] sm:$0xf]
        %v319 = vpack.c.bf16 %v310, %v310
        %321 = vrot.lane.b32.xlu0 %v319, 96
        %v322 = vpop.permute.xlu0 %321
        %vm323 = vcmask 64512
        %v325 = vsel %vm323, %v319, 0
        %v328 = vsel %vm323, %v322, 0
        %330 = vmatprep.subr.bf16.mxu0 0
        %331 = vmatpush1.bf16.xpose.msra.mxu0 %v328
        %332 = vmatprep.subr.bf16.mxu0 0
        %333 = vmatpush1.bf16.xpose.msra.mxu0 0
        %334 = vmatprep.subr.bf16.mxu0 0
        %335 = vmatpush1.bf16.xpose.msra.mxu0 0
        %336 = vmatprep.subr.bf16.mxu0 0
        %337 = vmatpush1.bf16.xpose.msra.mxu0 0
        %338 = vmatprep.subr.bf16.mxu0 0
        %339 = vmatpush1.bf16.xpose.msra.mxu0 0
        %340 = vmatprep.subr.bf16.mxu0 0
        %341 = vmatpush1.bf16.xpose.msra.mxu0 0
        %342 = vmatprep.subr.bf16.mxu0 0
        %343 = vmatpush1.bf16.xpose.msra.mxu0 0
        %344 = vmatprep.subr.bf16.mxu0 0
        %345 = vmatpush1.bf16.xpose.msra.mxu0 0
        %346 = vmatprep.subr.bf16.mxu0 0
        %347 = vmatpush1.bf16.xpose.msra.mxu0 0
        %348 = vmatprep.subr.bf16.mxu0 0
        %349 = vmatpush1.bf16.xpose.msra.mxu0 0
        %350 = vmatprep.subr.bf16.mxu0 0
        %351 = vmatpush1.bf16.xpose.msra.mxu0 0
        %352 = vmatprep.subr.bf16.mxu0 0
        %353 = vmatpush1.bf16.xpose.msra.mxu0 0
        %354 = vmatprep.subr.bf16.mxu0 0
        %355 = vmatpush1.bf16.xpose.msra.mxu0 0
        %356 = vmatprep.subr.bf16.mxu0 0
        %357 = vmatpush1.bf16.xpose.msra.mxu0 0
        %358 = vmatprep.subr.bf16.mxu0 0
        %359 = vmatpush1.bf16.xpose.msra.mxu0 0
        %360 = vmatprep.subr.bf16.mxu0 0
        %361 = vmatpush1.bf16.xpose.msra.mxu0 0
        %362 = vmatprep.mubr.bf16.mxu0 0
        %363 = vmatmul.mubr.bf16.gmra.mrb[0].mxu0 %v325
        %v364 = vpop.f32.mrb[0].mxu0
        %v365 = vadd.f32 0.0, %v364
        %v366 = vpop.f32.mrb[0].mxu0
        %v367 = vpop.f32.mrb[0].mxu0
        %v368 = vpop.f32.mrb[0].mxu0
        %369 = vdwg.mxu0
        %v370 = vsel %vm323, %v365, -inf
        %371 = vmax.xlane.f32.xlu0 %v370
        %v372 = vpop.xlane.xlu0 %371
        %v373 = vsub.f32 %v365, %v372
        %v374 = vmul.f32 %v373, 1.442695
        %v375 = vpow.pop %v374
        %v376 = vsel %vm323, %v375, 0.0
        %377 = vadd.xlane.f32.xlu0 %v376
        %v378 = vpop.xlane.xlu0 %377
        %v379 = vrcp.pop %v378
        %v380 = vmul.f32 %v375, %v379
        %v381 = vpack.c.bf16 %v380, %v380
        %382 = vrot.lane.b32.xlu0 %v319, 64
        %v383 = vpop.permute.xlu0 %382
        %v385 = vsel %vm323, %v381, 0
        %vm387 = vcmask 1043456
        %v389 = vsel %vm387, %v383, 0
        %391 = vmatprep.subr.bf16.mxu0 0
        %392 = vmatpush1.bf16.msra.mxu0 %v389
        %393 = vmatprep.subr.bf16.mxu0 0
        %394 = vmatpush1.bf16.msra.mxu0 0
        %395 = vmatprep.subr.bf16.mxu0 0
        %396 = vmatpush1.bf16.msra.mxu0 0
        %397 = vmatprep.subr.bf16.mxu0 0
        %398 = vmatpush1.bf16.msra.mxu0 0
        %399 = vmatprep.subr.bf16.mxu0 0
        %400 = vmatpush1.bf16.msra.mxu0 0
        %401 = vmatprep.subr.bf16.mxu0 0
        %402 = vmatpush1.bf16.msra.mxu0 0
        %403 = vmatprep.subr.bf16.mxu0 0
        %404 = vmatpush1.bf16.msra.mxu0 0
        %405 = vmatprep.subr.bf16.mxu0 0
        %406 = vmatpush1.bf16.msra.mxu0 0
        %407 = vmatprep.subr.bf16.mxu0 0
        %408 = vmatpush1.bf16.msra.mxu0 0
        %409 = vmatprep.subr.bf16.mxu0 0
        %410 = vmatpush1.bf16.msra.mxu0 0
        %411 = vmatprep.subr.bf16.mxu0 0
        %412 = vmatpush1.bf16.msra.mxu0 0
        %413 = vmatprep.subr.bf16.mxu0 0
        %414 = vmatpush1.bf16.msra.mxu0 0
        %415 = vmatprep.subr.bf16.mxu0 0
        %416 = vmatpush1.bf16.msra.mxu0 0
        %417 = vmatprep.subr.bf16.mxu0 0
        %418 = vmatpush1.bf16.msra.mxu0 0
        %419 = vmatprep.subr.bf16.mxu0 0
        %420 = vmatpush1.bf16.msra.mxu0 0
        %421 = vmatprep.subr.bf16.mxu0 0
        %422 = vmatpush1.bf16.msra.mxu0 0
        %423 = vmatprep.mubr.bf16.mxu0 0
        %424 = vmatmul.mubr.bf16.gmra.mrb[0].mxu0 %v385
        %v425 = vpop.f32.mrb[0].mxu0
        %v426 = vadd.f32 0.0, %v425
        %v427 = vpop.f32.mrb[0].mxu0
        %v428 = vpop.f32.mrb[0].mxu0
        %v429 = vpop.f32.mrb[0].mxu0
        %430 = vdwg.mxu0
        %v431 = vpack.c.bf16 %v426, %v426
        %432 = vrot.lane.b32.xlu0 %v319, 120
        %v433 = vpop.permute.xlu0 %432
        %434 = vrot.lane.b32.xlu0 %v319, 88
        %v435 = vpop.permute.xlu0 %434
        %v437 = vsel %vm323, %v433, 0
        %v440 = vsel %vm323, %v435, 0
        %442 = vmatprep.subr.bf16.mxu0 0
        %443 = vmatpush1.bf16.xpose.msra.mxu0 %v440
        %444 = vmatprep.subr.bf16.mxu0 0
        %445 = vmatpush1.bf16.xpose.msra.mxu0 0
        %446 = vmatprep.subr.bf16.mxu0 0
        %447 = vmatpush1.bf16.xpose.msra.mxu0 0
        %448 = vmatprep.subr.bf16.mxu0 0
        %449 = vmatpush1.bf16.xpose.msra.mxu0 0
        %450 = vmatprep.subr.bf16.mxu0 0
        %451 = vmatpush1.bf16.xpose.msra.mxu0 0
        %452 = vmatprep.subr.bf16.mxu0 0
        %453 = vmatpush1.bf16.xpose.msra.mxu0 0
        %454 = vmatprep.subr.bf16.mxu0 0
        %455 = vmatpush1.bf16.xpose.msra.mxu0 0
        %456 = vmatprep.subr.bf16.mxu0 0
        %457 = vmatpush1.bf16.xpose.msra.mxu0 0
        %458 = vmatprep.subr.bf16.mxu0 0
        %459 = vmatpush1.bf16.xpose.msra.mxu0 0
        %460 = vmatprep.subr.bf16.mxu0 0
        %461 = vmatpush1.bf16.xpose.msra.mxu0 0
        %462 = vmatprep.subr.bf16.mxu0 0
        %463 = vmatpush1.bf16.xpose.msra.mxu0 0
        %464 = vmatprep.subr.bf16.mxu0 0
        %465 = vmatpush1.bf16.xpose.msra.mxu0 0
        %466 = vmatprep.subr.bf16.mxu0 0
        %467 = vmatpush1.bf16.xpose.msra.mxu0 0
        %468 = vmatprep.subr.bf16.mxu0 0
        %469 = vmatpush1.bf16.xpose.msra.mxu0 0
        %470 = vmatprep.subr.bf16.mxu0 0
        %471 = vmatpush1.bf16.xpose.msra.mxu0 0
        %472 = vmatprep.subr.bf16.mxu0 0
        %473 = vmatpush1.bf16.xpose.msra.mxu0 0
        %474 = vmatprep.mubr.bf16.mxu0 0
        %475 = vmatmul.mubr.bf16.gmra.mrb[0].mxu0 %v437
        %v476 = vpop.f32.mrb[0].mxu0
        %v477 = vadd.f32 0.0, %v476
        %v478 = vpop.f32.mrb[0].mxu0
        %v479 = vpop.f32.mrb[0].mxu0
        %v480 = vpop.f32.mrb[0].mxu0
        %481 = vdwg.mxu0
        %v482 = vsel %vm323, %v477, -inf
        %483 = vmax.xlane.f32.xlu0 %v482
        %v484 = vpop.xlane.xlu0 %483
        %v485 = vsub.f32 %v477, %v484
        %v486 = vmul.f32 %v485, 1.442695
        %v487 = vpow.pop %v486
        %v488 = vsel %vm323, %v487, 0.0
        %489 = vadd.xlane.f32.xlu0 %v488
        %v490 = vpop.xlane.xlu0 %489
        %v491 = vrcp.pop %v490
        %v492 = vmul.f32 %v487, %v491
        %v493 = vpack.c.bf16 %v492, %v492
        %494 = vrot.lane.b32.xlu0 %v319, 56
        %v495 = vpop.permute.xlu0 %494
        %v497 = vsel %vm323, %v493, 0
        %v500 = vsel %vm387, %v495, 0
        %502 = vmatprep.subr.bf16.mxu0 0
        %503 = vmatpush1.bf16.msra.mxu0 %v500
        %504 = vmatprep.subr.bf16.mxu0 0
        %505 = vmatpush1.bf16.msra.mxu0 0
        %506 = vmatprep.subr.bf16.mxu0 0
        %507 = vmatpush1.bf16.msra.mxu0 0
        %508 = vmatprep.subr.bf16.mxu0 0
        %509 = vmatpush1.bf16.msra.mxu0 0
        %510 = vmatprep.subr.bf16.mxu0 0
        %511 = vmatpush1.bf16.msra.mxu0 0
        %512 = vmatprep.subr.bf16.mxu0 0
        %513 = vmatpush1.bf16.msra.mxu0 0
        %514 = vmatprep.subr.bf16.mxu0 0
        %515 = vmatpush1.bf16.msra.mxu0 0
        %516 = vmatprep.subr.bf16.mxu0 0
        %517 = vmatpush1.bf16.msra.mxu0 0
        %518 = vmatprep.subr.bf16.mxu0 0
        %519 = vmatpush1.bf16.msra.mxu0 0
        %520 = vmatprep.subr.bf16.mxu0 0
        %521 = vmatpush1.bf16.msra.mxu0 0
        %522 = vmatprep.subr.bf16.mxu0 0
        %523 = vmatpush1.bf16.msra.mxu0 0
        %524 = vmatprep.subr.bf16.mxu0 0
        %525 = vmatpush1.bf16.msra.mxu0 0
        %526 = vmatprep.subr.bf16.mxu0 0
        %527 = vmatpush1.bf16.msra.mxu0 0
        %528 = vmatprep.subr.bf16.mxu0 0
        %529 = vmatpush1.bf16.msra.mxu0 0
        %530 = vmatprep.subr.bf16.mxu0 0
        %531 = vmatpush1.bf16.msra.mxu0 0
        %532 = vmatprep.subr.bf16.mxu0 0
        %533 = vmatpush1.bf16.msra.mxu0 0
        %534 = vmatprep.mubr.bf16.mxu0 0
        %535 = vmatmul.mubr.bf16.gmra.mrb[0].mxu0 %v497
        %v536 = vpop.f32.mrb[0].mxu0
        %v537 = vadd.f32 0.0, %v536
        %v538 = vpop.f32.mrb[0].mxu0
        %v539 = vpop.f32.mrb[0].mxu0
        %v540 = vpop.f32.mrb[0].mxu0
        %541 = vdwg.mxu0
        %v542 = vpack.c.bf16 %v537, %v537
        %v544 = vsel %vm323, %v542, 0
        %v547 = vsel %vm387, %v316, 0
        %549 = vmatprep.subr.bf16.mxu0 0
        %550 = vmatpush1.bf16.msra.mxu0 %v547
        %551 = vmatprep.subr.bf16.mxu0 0
        %552 = vmatpush1.bf16.msra.mxu0 0
        %553 = vmatprep.subr.bf16.mxu0 0
        %554 = vmatpush1.bf16.msra.mxu0 0
        %555 = vmatprep.subr.bf16.mxu0 0
        %556 = vmatpush1.bf16.msra.mxu0 0
        %557 = vmatprep.subr.bf16.mxu0 0
        %558 = vmatpush1.bf16.msra.mxu0 0
        %559 = vmatprep.subr.bf16.mxu0 0
        %560 = vmatpush1.bf16.msra.mxu0 0
        %561 = vmatprep.subr.bf16.mxu0 0
        %562 = vmatpush1.bf16.msra.mxu0 0
        %563 = vmatprep.subr.bf16.mxu0 0
        %564 = vmatpush1.bf16.msra.mxu0 0
        %565 = vmatprep.subr.bf16.mxu0 0
        %566 = vmatpush1.bf16.msra.mxu0 0
        %567 = vmatprep.subr.bf16.mxu0 0
        %568 = vmatpush1.bf16.msra.mxu0 0
        %569 = vmatprep.subr.bf16.mxu0 0
        %570 = vmatpush1.bf16.msra.mxu0 0
        %571 = vmatprep.subr.bf16.mxu0 0
        %572 = vmatpush1.bf16.msra.mxu0 0
        %573 = vmatprep.subr.bf16.mxu0 0
        %574 = vmatpush1.bf16.msra.mxu0 0
        %575 = vmatprep.subr.bf16.mxu0 0
        %576 = vmatpush1.bf16.msra.mxu0 0
        %577 = vmatprep.subr.bf16.mxu0 0
        %578 = vmatpush1.bf16.msra.mxu0 0
        %579 = vmatprep.subr.bf16.mxu0 0
        %580 = vmatpush1.bf16.msra.mxu0 0
        %581 = vmatprep.mubr.bf16.mxu0 0
        %582 = vmatmul.mubr.bf16.gmra.mrb[0].mxu0 %v544
        %v583 = vpop.f32.mrb[0].mxu0
        %v584 = vadd.f32 0.0, %v583
        %v585 = vpop.f32.mrb[0].mxu0
        %v586 = vpop.f32.mrb[0].mxu0
        %v587 = vpop.f32.mrb[0].mxu0
        %588 = vdwg.mxu0
        %v590 = vsel %vm323, %v431, 0
        %v593 = vsel %vm387, %v315, 0
        %595 = vmatprep.subr.bf16.mxu0 0
        %596 = vmatpush1.bf16.msra.mxu0 %v593
        %597 = vmatprep.subr.bf16.mxu0 0
        %598 = vmatpush1.bf16.msra.mxu0 0
        %599 = vmatprep.subr.bf16.mxu0 0
        %600 = vmatpush1.bf16.msra.mxu0 0
        %601 = vmatprep.subr.bf16.mxu0 0
        %602 = vmatpush1.bf16.msra.mxu0 0
        %603 = vmatprep.subr.bf16.mxu0 0
        %604 = vmatpush1.bf16.msra.mxu0 0
        %605 = vmatprep.subr.bf16.mxu0 0
        %606 = vmatpush1.bf16.msra.mxu0 0
        %607 = vmatprep.subr.bf16.mxu0 0
        %608 = vmatpush1.bf16.msra.mxu0 0
        %609 = vmatprep.subr.bf16.mxu0 0
        %610 = vmatpush1.bf16.msra.mxu0 0
        %611 = vmatprep.subr.bf16.mxu0 0
        %612 = vmatpush1.bf16.msra.mxu0 0
        %613 = vmatprep.subr.bf16.mxu0 0
        %614 = vmatpush1.bf16.msra.mxu0 0
        %615 = vmatprep.subr.bf16.mxu0 0
        %616 = vmatpush1.bf16.msra.mxu0 0
        %617 = vmatprep.subr.bf16.mxu0 0
        %618 = vmatpush1.bf16.msra.mxu0 0
        %619 = vmatprep.subr.bf16.mxu0 0
        %620 = vmatpush1.bf16.msra.mxu0 0
        %621 = vmatprep.subr.bf16.mxu0 0
        %622 = vmatpush1.bf16.msra.mxu0 0
        %623 = vmatprep.subr.bf16.mxu0 0
        %624 = vmatpush1.bf16.msra.mxu0 0
        %625 = vmatprep.subr.bf16.mxu0 0
        %626 = vmatpush1.bf16.msra.mxu0 0
        %627 = vmatprep.mubr.bf16.mxu0 0
        %628 = vmatmul.mubr.bf16.gmra.mrb[0].mxu0 %v590
        %v629 = vpop.f32.mrb[0].mxu0
        %v630 = vadd.f32 %v584, %v629
        %v631 = vpop.f32.mrb[0].mxu0
        %v632 = vpop.f32.mrb[0].mxu0
        %v633 = vpop.f32.mrb[0].mxu0
        %634 = vdwg.mxu0
        %635 = vrot.lane.b32.xlu0 %v319, 112
        %v636 = vpop.permute.xlu0 %635
        %637 = vrot.lane.b32.xlu0 %v319, 80
        %v638 = vpop.permute.xlu0 %637
        %v640 = vsel %vm323, %v636, 0
        %v643 = vsel %vm323, %v638, 0
        %645 = vmatprep.subr.bf16.mxu0 0
        %646 = vmatpush1.bf16.xpose.msra.mxu0 %v643
        %647 = vmatprep.subr.bf16.mxu0 0
        %648 = vmatpush1.bf16.xpose.msra.mxu0 0
        %649 = vmatprep.subr.bf16.mxu0 0
        %650 = vmatpush1.bf16.xpose.msra.mxu0 0
        %651 = vmatprep.subr.bf16.mxu0 0
        %652 = vmatpush1.bf16.xpose.msra.mxu0 0
        %653 = vmatprep.subr.bf16.mxu0 0
        %654 = vmatpush1.bf16.xpose.msra.mxu0 0
        %655 = vmatprep.subr.bf16.mxu0 0
        %656 = vmatpush1.bf16.xpose.msra.mxu0 0
        %657 = vmatprep.subr.bf16.mxu0 0
        %658 = vmatpush1.bf16.xpose.msra.mxu0 0
        %659 = vmatprep.subr.bf16.mxu0 0
        %660 = vmatpush1.bf16.xpose.msra.mxu0 0
        %661 = vmatprep.subr.bf16.mxu0 0
        %662 = vmatpush1.bf16.xpose.msra.mxu0 0
        %663 = vmatprep.subr.bf16.mxu0 0
        %664 = vmatpush1.bf16.xpose.msra.mxu0 0
        %665 = vmatprep.subr.bf16.mxu0 0
        %666 = vmatpush1.bf16.xpose.msra.mxu0 0
        %667 = vmatprep.subr.bf16.mxu0 0
        %668 = vmatpush1.bf16.xpose.msra.mxu0 0
        %669 = vmatprep.subr.bf16.mxu0 0
        %670 = vmatpush1.bf16.xpose.msra.mxu0 0
        %671 = vmatprep.subr.bf16.mxu0 0
        %672 = vmatpush1.bf16.xpose.msra.mxu0 0
        %673 = vmatprep.subr.bf16.mxu0 0
        %674 = vmatpush1.bf16.xpose.msra.mxu0 0
        %675 = vmatprep.subr.bf16.mxu0 0
        %676 = vmatpush1.bf16.xpose.msra.mxu0 0
        %677 = vmatprep.mubr.bf16.mxu0 0
        %678 = vmatmul.mubr.bf16.gmra.mrb[0].mxu0 %v640
        %v679 = vpop.f32.mrb[0].mxu0
        %v680 = vadd.f32 0.0, %v679
        %v681 = vpop.f32.mrb[0].mxu0
        %v682 = vpop.f32.mrb[0].mxu0
        %v683 = vpop.f32.mrb[0].mxu0
        %684 = vdwg.mxu0
        %v685 = vsel %vm323, %v680, -inf
        %686 = vmax.xlane.f32.xlu0 %v685
        %v687 = vpop.xlane.xlu0 %686
        %v688 = vsub.f32 %v680, %v687
        %v689 = vmul.f32 %v688, 1.442695
        %v690 = vpow.pop %v689
        %v691 = vsel %vm323, %v690, 0.0
        %692 = vadd.xlane.f32.xlu0 %v691
        %v693 = vpop.xlane.xlu0 %692
        %v694 = vrcp.pop %v693
        %v695 = vmul.f32 %v690, %v694
        %v696 = vpack.c.bf16 %v695, %v695
        %697 = vrot.lane.b32.xlu0 %v319, 48
        %v698 = vpop.permute.xlu0 %697
        %v700 = vsel %vm323, %v696, 0
        %v703 = vsel %vm387, %v698, 0
        %705 = vmatprep.subr.bf16.mxu0 0
        %706 = vmatpush1.bf16.msra.mxu0 %v703
        %707 = vmatprep.subr.bf16.mxu0 0
        %708 = vmatpush1.bf16.msra.mxu0 0
        %709 = vmatprep.subr.bf16.mxu0 0
        %710 = vmatpush1.bf16.msra.mxu0 0
        %711 = vmatprep.subr.bf16.mxu0 0
        %712 = vmatpush1.bf16.msra.mxu0 0
        %713 = vmatprep.subr.bf16.mxu0 0
        %714 = vmatpush1.bf16.msra.mxu0 0
        %715 = vmatprep.subr.bf16.mxu0 0
        %716 = vmatpush1.bf16.msra.mxu0 0
        %717 = vmatprep.subr.bf16.mxu0 0
        %718 = vmatpush1.bf16.msra.mxu0 0
        %719 = vmatprep.subr.bf16.mxu0 0
        %720 = vmatpush1.bf16.msra.mxu0 0
        %721 = vmatprep.subr.bf16.mxu0 0
        %722 = vmatpush1.bf16.msra.mxu0 0
        %723 = vmatprep.subr.bf16.mxu0 0
        %724 = vmatpush1.bf16.msra.mxu0 0
        %725 = vmatprep.subr.bf16.mxu0 0
        %726 = vmatpush1.bf16.msra.mxu0 0
        %727 = vmatprep.subr.bf16.mxu0 0
        %728 = vmatpush1.bf16.msra.mxu0 0
        %729 = vmatprep.subr.bf16.mxu0 0
        %730 = vmatpush1.bf16.msra.mxu0 0
        %731 = vmatprep.subr.bf16.mxu0 0
        %732 = vmatpush1.bf16.msra.mxu0 0
        %733 = vmatprep.subr.bf16.mxu0 0
        %734 = vmatpush1.bf16.msra.mxu0 0
        %735 = vmatprep.subr.bf16.mxu0 0
        %736 = vmatpush1.bf16.msra.mxu0 0
        %737 = vmatprep.mubr.bf16.mxu0 0
        %738 = vmatmul.mubr.bf16.gmra.mrb[0].mxu0 %v700
        %v739 = vpop.f32.mrb[0].mxu0
        %v740 = vadd.f32 0.0, %v739
        %v741 = vpop.f32.mrb[0].mxu0
        %v742 = vpop.f32.mrb[0].mxu0
        %v743 = vpop.f32.mrb[0].mxu0
        %744 = vdwg.mxu0
        %v745 = vpack.c.bf16 %v740, %v740
        %v747 = vsel %vm323, %v745, 0
        %v750 = vsel %vm387, %v317, 0
        %752 = vmatprep.subr.bf16.mxu0 0
        %753 = vmatpush1.bf16.msra.mxu0 %v750
        %754 = vmatprep.subr.bf16.mxu0 0
        %755 = vmatpush1.bf16.msra.mxu0 0
        %756 = vmatprep.subr.bf16.mxu0 0
        %757 = vmatpush1.bf16.msra.mxu0 0
        %758 = vmatprep.subr.bf16.mxu0 0
        %759 = vmatpush1.bf16.msra.mxu0 0
        %760 = vmatprep.subr.bf16.mxu0 0
        %761 = vmatpush1.bf16.msra.mxu0 0
        %762 = vmatprep.subr.bf16.mxu0 0
        %763 = vmatpush1.bf16.msra.mxu0 0
        %764 = vmatprep.subr.bf16.mxu0 0
        %765 = vmatpush1.bf16.msra.mxu0 0
        %766 = vmatprep.subr.bf16.mxu0 0
        %767 = vmatpush1.bf16.msra.mxu0 0
        %768 = vmatprep.subr.bf16.mxu0 0
        %769 = vmatpush1.bf16.msra.mxu0 0
        %770 = vmatprep.subr.bf16.mxu0 0
        %771 = vmatpush1.bf16.msra.mxu0 0
        %772 = vmatprep.subr.bf16.mxu0 0
        %773 = vmatpush1.bf16.msra.mxu0 0
        %774 = vmatprep.subr.bf16.mxu0 0
        %775 = vmatpush1.bf16.msra.mxu0 0
        %776 = vmatprep.subr.bf16.mxu0 0
        %777 = vmatpush1.bf16.msra.mxu0 0
        %778 = vmatprep.subr.bf16.mxu0 0
        %779 = vmatpush1.bf16.msra.mxu0 0
        %780 = vmatprep.subr.bf16.mxu0 0
        %781 = vmatpush1.bf16.msra.mxu0 0
        %782 = vmatprep.subr.bf16.mxu0 0
        %783 = vmatpush1.bf16.msra.mxu0 0
        %784 = vmatprep.mubr.bf16.mxu0 0
        %785 = vmatmul.mubr.bf16.gmra.mrb[0].mxu0 %v747
        %v786 = vpop.f32.mrb[0].mxu0
        %v787 = vadd.f32 0.0, %v786
        %v788 = vpop.f32.mrb[0].mxu0
        %v789 = vpop.f32.mrb[0].mxu0
        %v790 = vpop.f32.mrb[0].mxu0
        %791 = vdwg.mxu0
        %v792 = vadd.f32 %v630, %v787
        %793 = vrot.lane.b32.xlu0 %v319, 104
        %v794 = vpop.permute.xlu0 %793
        %795 = vrot.lane.b32.xlu0 %v319, 72
        %v796 = vpop.permute.xlu0 %795
        %v798 = vsel %vm323, %v794, 0
        %v801 = vsel %vm323, %v796, 0
        %803 = vmatprep.subr.bf16.mxu0 0
        %804 = vmatpush1.bf16.xpose.msra.mxu0 %v801
        %805 = vmatprep.subr.bf16.mxu0 0
        %806 = vmatpush1.bf16.xpose.msra.mxu0 0
        %807 = vmatprep.subr.bf16.mxu0 0
        %808 = vmatpush1.bf16.xpose.msra.mxu0 0
        %809 = vmatprep.subr.bf16.mxu0 0
        %810 = vmatpush1.bf16.xpose.msra.mxu0 0
        %811 = vmatprep.subr.bf16.mxu0 0
        %812 = vmatpush1.bf16.xpose.msra.mxu0 0
        %813 = vmatprep.subr.bf16.mxu0 0
        %814 = vmatpush1.bf16.xpose.msra.mxu0 0
        %815 = vmatprep.subr.bf16.mxu0 0
        %816 = vmatpush1.bf16.xpose.msra.mxu0 0
        %817 = vmatprep.subr.bf16.mxu0 0
        %818 = vmatpush1.bf16.xpose.msra.mxu0 0
        %819 = vmatprep.subr.bf16.mxu0 0
        %820 = vmatpush1.bf16.xpose.msra.mxu0 0
        %821 = vmatprep.subr.bf16.mxu0 0
        %822 = vmatpush1.bf16.xpose.msra.mxu0 0
        %823 = vmatprep.subr.bf16.mxu0 0
        %824 = vmatpush1.bf16.xpose.msra.mxu0 0
        %825 = vmatprep.subr.bf16.mxu0 0
        %826 = vmatpush1.bf16.xpose.msra.mxu0 0
        %827 = vmatprep.subr.bf16.mxu0 0
        %828 = vmatpush1.bf16.xpose.msra.mxu0 0
        %829 = vmatprep.subr.bf16.mxu0 0
        %830 = vmatpush1.bf16.xpose.msra.mxu0 0
        %831 = vmatprep.subr.bf16.mxu0 0
        %832 = vmatpush1.bf16.xpose.msra.mxu0 0
        %833 = vmatprep.subr.bf16.mxu0 0
        %834 = vmatpush1.bf16.xpose.msra.mxu0 0
        %835 = vmatprep.mubr.bf16.mxu0 0
        %836 = vmatmul.mubr.bf16.gmra.mrb[0].mxu0 %v798
        %v837 = vpop.f32.mrb[0].mxu0
        %v838 = vadd.f32 0.0, %v837
        %v839 = vpop.f32.mrb[0].mxu0
        %v840 = vpop.f32.mrb[0].mxu0
        %v841 = vpop.f32.mrb[0].mxu0
        %842 = vdwg.mxu0
        %v843 = vsel %vm323, %v838, -inf
        %844 = vmax.xlane.f32.xlu0 %v843
        %v845 = vpop.xlane.xlu0 %844
        %v846 = vsub.f32 %v838, %v845
        %v847 = vmul.f32 %v846, 1.442695
        %v848 = vpow.pop %v847
        %v849 = vsel %vm323, %v848, 0.0
        %850 = vadd.xlane.f32.xlu0 %v849
        %v851 = vpop.xlane.xlu0 %850
        %v852 = vrcp.pop %v851
        %v853 = vmul.f32 %v848, %v852
        %v854 = vpack.c.bf16 %v853, %v853
        %855 = vrot.lane.b32.xlu0 %v319, 40
        %v856 = vpop.permute.xlu0 %855
        %v858 = vsel %vm323, %v854, 0
        %v861 = vsel %vm387, %v856, 0
        %863 = vmatprep.subr.bf16.mxu0 0
        %864 = vmatpush1.bf16.msra.mxu0 %v861
        %865 = vmatprep.subr.bf16.mxu0 0
        %866 = vmatpush1.bf16.msra.mxu0 0
        %867 = vmatprep.subr.bf16.mxu0 0
        %868 = vmatpush1.bf16.msra.mxu0 0
        %869 = vmatprep.subr.bf16.mxu0 0
        %870 = vmatpush1.bf16.msra.mxu0 0
        %871 = vmatprep.subr.bf16.mxu0 0
        %872 = vmatpush1.bf16.msra.mxu0 0
        %873 = vmatprep.subr.bf16.mxu0 0
        %874 = vmatpush1.bf16.msra.mxu0 0
        %875 = vmatprep.subr.bf16.mxu0 0
        %876 = vmatpush1.bf16.msra.mxu0 0
        %877 = vmatprep.subr.bf16.mxu0 0
        %878 = vmatpush1.bf16.msra.mxu0 0
        %879 = vmatprep.subr.bf16.mxu0 0
        %880 = vmatpush1.bf16.msra.mxu0 0
        %881 = vmatprep.subr.bf16.mxu0 0
        %882 = vmatpush1.bf16.msra.mxu0 0
        %883 = vmatprep.subr.bf16.mxu0 0
        %884 = vmatpush1.bf16.msra.mxu0 0
        %885 = vmatprep.subr.bf16.mxu0 0
        %886 = vmatpush1.bf16.msra.mxu0 0
        %887 = vmatprep.subr.bf16.mxu0 0
        %888 = vmatpush1.bf16.msra.mxu0 0
        %889 = vmatprep.subr.bf16.mxu0 0
        %890 = vmatpush1.bf16.msra.mxu0 0
        %891 = vmatprep.subr.bf16.mxu0 0
        %892 = vmatpush1.bf16.msra.mxu0 0
        %893 = vmatprep.subr.bf16.mxu0 0
        %894 = vmatpush1.bf16.msra.mxu0 0
        %895 = vmatprep.mubr.bf16.mxu0 0
        %896 = vmatmul.mubr.bf16.gmra.mrb[0].mxu0 %v858
        %v897 = vpop.f32.mrb[0].mxu0
        %v898 = vadd.f32 0.0, %v897
        %v899 = vpop.f32.mrb[0].mxu0
        %v900 = vpop.f32.mrb[0].mxu0
        %v901 = vpop.f32.mrb[0].mxu0
        %902 = vdwg.mxu0
        %v903 = vpack.c.bf16 %v898, %v898
        %v905 = vsel %vm323, %v903, 0
        %v908 = vsel %vm387, %v318, 0
        %910 = vmatprep.subr.bf16.mxu0 0
        %911 = vmatpush1.bf16.msra.mxu0 %v908
        %912 = vmatprep.subr.bf16.mxu0 0
        %913 = vmatpush1.bf16.msra.mxu0 0
        %914 = vmatprep.subr.bf16.mxu0 0
        %915 = vmatpush1.bf16.msra.mxu0 0
        %916 = vmatprep.subr.bf16.mxu0 0
        %917 = vmatpush1.bf16.msra.mxu0 0
        %918 = vmatprep.subr.bf16.mxu0 0
        %919 = vmatpush1.bf16.msra.mxu0 0
        %920 = vmatprep.subr.bf16.mxu0 0
        %921 = vmatpush1.bf16.msra.mxu0 0
        %922 = vmatprep.subr.bf16.mxu0 0
        %923 = vmatpush1.bf16.msra.mxu0 0
        %924 = vmatprep.subr.bf16.mxu0 0
        %925 = vmatpush1.bf16.msra.mxu0 0
        %926 = vmatprep.subr.bf16.mxu0 0
        %927 = vmatpush1.bf16.msra.mxu0 0
        %928 = vmatprep.subr.bf16.mxu0 0
        %929 = vmatpush1.bf16.msra.mxu0 0
        %930 = vmatprep.subr.bf16.mxu0 0
        %931 = vmatpush1.bf16.msra.mxu0 0
        %932 = vmatprep.subr.bf16.mxu0 0
        %933 = vmatpush1.bf16.msra.mxu0 0
        %934 = vmatprep.subr.bf16.mxu0 0
        %935 = vmatpush1.bf16.msra.mxu0 0
        %936 = vmatprep.subr.bf16.mxu0 0
        %937 = vmatpush1.bf16.msra.mxu0 0
        %938 = vmatprep.subr.bf16.mxu0 0
        %939 = vmatpush1.bf16.msra.mxu0 0
        %940 = vmatprep.subr.bf16.mxu0 0
        %941 = vmatpush1.bf16.msra.mxu0 0
        %942 = vmatprep.mubr.bf16.mxu0 0
        %943 = vmatmul.mubr.bf16.gmra.mrb[0].mxu0 %v905
        %v944 = vpop.f32.mrb[0].mxu0
        %v945 = vadd.f32 0.0, %v944
        %v946 = vpop.f32.mrb[0].mxu0
        %v947 = vpop.f32.mrb[0].mxu0
        %v948 = vpop.f32.mrb[0].mxu0
        %949 = vdwg.mxu0
        %v950 = vadd.f32 %v792, %v945
        %v951 = vlaneseq
        %v952 = vshrl.u32 %v951, 7
        %v953 = vsub.s32 1, %v952
        %v954 = vrot.slane %v249, %v953
        %v955 = vadd.f32 %v950, %v954
        %v956 = vadd.f32 %v955, %v248
        %v957 = vsel %vm271, %v956, 0.0
        %958 = vadd.xlane.f32.xlu0 %v957
        %v959 = vpop.xlane.xlu0 %958
        %v960 = vrcp.pop 32.0
        %v961 = vmul.f32 %v959, %v960
        %v962 = vsub.f32 %v956, %v961
        %v963 = vmul.f32 %v962, %v962
        %v964 = vsel %vm271, %v963, 0.0
        %965 = vadd.xlane.f32.xlu0 %v964
        %v966 = vpop.xlane.xlu0 %965
        %v967 = vmul.f32 %v966, %v960
        %v968 = vadd.f32 %v967, 1e-05
        %v969 = vrsqrt.pop %v968
        %v970 = vmul.f32 %v962, %v969
        %v971 = vlaneseq
        %v972 = vshrl.u32 %v971, 7
        %v973 = vsub.s32 2, %v972
        %v974 = vrot.slane %v249, %v973
        %v975 = vmul.f32 %v970, %v974
        %v976 = vlaneseq
        %v977 = vshrl.u32 %v976, 7
        %v978 = vsub.s32 3, %v977
        %v979 = vrot.slane %v249, %v978
        %v980 = vadd.f32 %v975, %v979
        %v981 = vpack.c.bf16 %v980, %v980
        %v982 = vld [vmem:[%s3] sm:$0xf]
        %v983 = vld [vmem:[%s3 + $0x4] sm:$0xf]
        %v984 = vld [vmem:[%s3 + $0x8] sm:$0xf]
        %v985 = vld [vmem:[%s3 + $0xc] sm:$0xf]
        %v986 = vlaneseq
        %v987 = vshrl.u32 %v986, 7
        %v988 = vsub.s32 4, %v987
        %v989 = vrot.slane %v249, %v988
        %v994 = vunpack.c.l.b16 %v982
        %v995 = vunpack.c.l.b16 %v983
        %v996 = vunpack.c.l.b16 %v984
        %v997 = vunpack.c.l.b16 %v985
        %v998 = vpack.c.b16 %v995, %v994
        %v999 = vpack.c.b16 %v997, %v996
        %v1003 = vsel %vm271, %v981, 0
        %1005 = vmatprep.subr.bf16.mxu0 0
        %1006 = vmatpush1.bf16.msra.mxu0 %v998
        %1007 = vmatprep.subr.bf16.mxu0 0
        %1008 = vmatpush1.bf16.msra.mxu0 %v999
        %1009 = vmatprep.subr.bf16.mxu0 0
        %1010 = vmatpush1.bf16.msra.mxu0 0
        %1011 = vmatprep.subr.bf16.mxu0 0
        %1012 = vmatpush1.bf16.msra.mxu0 0
        %1013 = vmatprep.subr.bf16.mxu0 0
        %1014 = vmatpush1.bf16.msra.mxu0 0
        %1015 = vmatprep.subr.bf16.mxu0 0
        %1016 = vmatpush1.bf16.msra.mxu0 0
        %1017 = vmatprep.subr.bf16.mxu0 0
        %1018 = vmatpush1.bf16.msra.mxu0 0
        %1019 = vmatprep.subr.bf16.mxu0 0
        %1020 = vmatpush1.bf16.msra.mxu0 0
        %1021 = vmatprep.subr.bf16.mxu0 0
        %1022 = vmatpush1.bf16.msra.mxu0 0
        %1023 = vmatprep.subr.bf16.mxu0 0
        %1024 = vmatpush1.bf16.msra.mxu0 0
        %1025 = vmatprep.subr.bf16.mxu0 0
        %1026 = vmatpush1.bf16.msra.mxu0 0
        %1027 = vmatprep.subr.bf16.mxu0 0
        %1028 = vmatpush1.bf16.msra.mxu0 0
        %1029 = vmatprep.subr.bf16.mxu0 0
        %1030 = vmatpush1.bf16.msra.mxu0 0
        %1031 = vmatprep.subr.bf16.mxu0 0
        %1032 = vmatpush1.bf16.msra.mxu0 0
        %1033 = vmatprep.subr.bf16.mxu0 0
        %1034 = vmatpush1.bf16.msra.mxu0 0
        %1035 = vmatprep.subr.bf16.mxu0 0
        %1036 = vmatpush1.bf16.msra.mxu0 0
        %1037 = vmatprep.mubr.bf16.mxu0 0
        %1038 = vmatmul.mubr.bf16.gmra.mrb[0].mxu0 %v1003
        %v1039 = vpop.f32.mrb[0].mxu0
        %v1040 = vadd.f32 %v989, %v1039
        %v1041 = vpop.f32.mrb[0].mxu0
        %v1042 = vpop.f32.mrb[0].mxu0
        %v1043 = vpop.f32.mrb[0].mxu0
        %1044 = vdwg.mxu0
        %v1045 = vmax.f32 %v1040, 0.0
        %v1046 = vpack.c.bf16 %v1045, %v1045
        %v1047 = vld [vmem:[%s4] sm:$0xf]
        %v1048 = vld [vmem:[%s4 + $0x4] sm:$0xf]
        %v1049 = vld [vmem:[%s4 + $0x8] sm:$0xf]
        %v1050 = vld [vmem:[%s4 + $0xc] sm:$0xf]
        %v1051 = vld [vmem:[%s4 + $0x10] sm:$0xf]
        %v1052 = vld [vmem:[%s4 + $0x14] sm:$0xf]
        %v1053 = vld [vmem:[%s4 + $0x18] sm:$0xf]
        %v1054 = vld [vmem:[%s4 + $0x1c] sm:$0xf]
        %v1055 = vld [vmem:[%s4 + $0x20] sm:$0xf]
        %v1056 = vld [vmem:[%s4 + $0x24] sm:$0xf]
        %v1057 = vld [vmem:[%s4 + $0x28] sm:$0xf]
        %v1058 = vld [vmem:[%s4 + $0x2c] sm:$0xf]
        %v1059 = vld [vmem:[%s4 + $0x30] sm:$0xf]
        %v1060 = vld [vmem:[%s4 + $0x34] sm:$0xf]
        %v1061 = vld [vmem:[%s4 + $0x38] sm:$0xf]
        %v1062 = vld [vmem:[%s4 + $0x3c] sm:$0xf]
        %v1063 = vlaneseq
        %v1064 = vshrl.u32 %v1063, 7
        %v1065 = vsub.s32 5, %v1064
        %v1066 = vrot.slane %v249, %v1065
        %v1083 = vunpack.c.l.b16 %v1047
        %v1084 = vunpack.c.l.b16 %v1048
        %v1085 = vunpack.c.l.b16 %v1049
        %v1086 = vunpack.c.l.b16 %v1050
        %v1087 = vunpack.c.l.b16 %v1051
        %v1088 = vunpack.c.l.b16 %v1052
        %v1089 = vunpack.c.l.b16 %v1053
        %v1090 = vunpack.c.l.b16 %v1054
        %v1091 = vunpack.c.l.b16 %v1055
        %v1092 = vunpack.c.l.b16 %v1056
        %v1093 = vunpack.c.l.b16 %v1057
        %v1094 = vunpack.c.l.b16 %v1058
        %v1095 = vunpack.c.l.b16 %v1059
        %v1096 = vunpack.c.l.b16 %v1060
        %v1097 = vunpack.c.l.b16 %v1061
        %v1098 = vunpack.c.l.b16 %v1062
        %v1099 = vpack.c.b16 %v1084, %v1083
        %v1100 = vpack.c.b16 %v1086, %v1085
        %v1101 = vpack.c.b16 %v1088, %v1087
        %v1102 = vpack.c.b16 %v1090, %v1089
        %v1103 = vpack.c.b16 %v1092, %v1091
        %v1104 = vpack.c.b16 %v1094, %v1093
        %v1105 = vpack.c.b16 %v1096, %v1095
        %v1106 = vpack.c.b16 %v1098, %v1097
        %1115 = vmatprep.subr.bf16.mxu0 0
        %1116 = vmatpush1.bf16.msra.mxu0 %v1099
        %1117 = vmatprep.subr.bf16.mxu0 0
        %1118 = vmatpush1.bf16.msra.mxu0 %v1100
        %1119 = vmatprep.subr.bf16.mxu0 0
        %1120 = vmatpush1.bf16.msra.mxu0 %v1101
        %1121 = vmatprep.subr.bf16.mxu0 0
        %1122 = vmatpush1.bf16.msra.mxu0 %v1102
        %1123 = vmatprep.subr.bf16.mxu0 0
        %1124 = vmatpush1.bf16.msra.mxu0 %v1103
        %1125 = vmatprep.subr.bf16.mxu0 0
        %1126 = vmatpush1.bf16.msra.mxu0 %v1104
        %1127 = vmatprep.subr.bf16.mxu0 0
        %1128 = vmatpush1.bf16.msra.mxu0 %v1105
        %1129 = vmatprep.subr.bf16.mxu0 0
        %1130 = vmatpush1.bf16.msra.mxu0 %v1106
        %1131 = vmatprep.subr.bf16.mxu0 0
        %1132 = vmatpush1.bf16.msra.mxu0 0
        %1133 = vmatprep.subr.bf16.mxu0 0
        %1134 = vmatpush1.bf16.msra.mxu0 0
        %1135 = vmatprep.subr.bf16.mxu0 0
        %1136 = vmatpush1.bf16.msra.mxu0 0
        %1137 = vmatprep.subr.bf16.mxu0 0
        %1138 = vmatpush1.bf16.msra.mxu0 0
        %1139 = vmatprep.subr.bf16.mxu0 0
        %1140 = vmatpush1.bf16.msra.mxu0 0
        %1141 = vmatprep.subr.bf16.mxu0 0
        %1142 = vmatpush1.bf16.msra.mxu0 0
        %1143 = vmatprep.subr.bf16.mxu0 0
        %1144 = vmatpush1.bf16.msra.mxu0 0
        %1145 = vmatprep.subr.bf16.mxu0 0
        %1146 = vmatpush1.bf16.msra.mxu0 0
        %1147 = vmatprep.mubr.bf16.mxu0 0
        %1148 = vmatmul.mubr.bf16.gmra.mrb[0].mxu0 %v1046
        %v1149 = vpop.f32.mrb[0].mxu0
        %v1150 = vadd.f32 %v1066, %v1149
        %v1151 = vpop.f32.mrb[0].mxu0
        %v1152 = vpop.f32.mrb[0].mxu0
        %v1153 = vpop.f32.mrb[0].mxu0
        %1154 = vdwg.mxu0
        %v1155 = vadd.f32 %v1150, %v980
        %v1156 = vsel %vm271, %v1155, 0.0
        %1157 = vadd.xlane.f32.xlu0 %v1156
        %v1158 = vpop.xlane.xlu0 %1157
        %v1159 = vmul.f32 %v1158, %v960
        %v1160 = vsub.f32 %v1155, %v1159
        %v1161 = vmul.f32 %v1160, %v1160
        %v1162 = vsel %vm271, %v1161, 0.0
        %1163 = vadd.xlane.f32.xlu0 %v1162
        %v1164 = vpop.xlane.xlu0 %1163
        %v1165 = vmul.f32 %v1164, %v960
        %v1166 = vadd.f32 %v1165, 1e-05
        %v1167 = vrsqrt.pop %v1166
        %v1168 = vmul.f32 %v1160, %v1167
        %v1169 = vlaneseq
        %v1170 = vshrl.u32 %v1169, 7
        %v1171 = vsub.s32 6, %v1170
        %v1172 = vrot.slane %v249, %v1171
        %v1173 = vmul.f32 %v1168, %v1172
        %v1174 = vlaneseq
        %v1175 = vshrl.u32 %v1174, 7
        %v1176 = vsub.s32 7, %v1175
        %v1177 = vrot.slane %v249, %v1176
        %v1178 = vadd.f32 %v1173, %v1177
        %1179 = vst.msk [vmem:[%s242] sm:$0xff] %vm271, %v1178
        %s1180 = sand.u32 %s159, 1
        %s1181 = scalar_lea.sflag [#allocation3], %s1180
        %s1182 = sand.u32 %s159, 1
        %s1183 = smul.addr %s1182, 8
        %s1184 = scalar_lea.vmem [#allocation2], %s1183
        // Predicated region
        $region45: #{tpu_custom_call.1} parent=43 // pred_check
          %p1185 = pneg %p169
        $region46: #{tpu_custom_call.1} parent=43 // pred_check_branch
          %1187 = sbr.rel (%p1185) target = $region48
        $region47: #{tpu_custom_call.1} parent=43 // pred_region
          %s1189 = ssub.s32 128, 128
          %1190 = vsyncadd %s1181, %s1189
          %s1191 = smul.addr %s20, 128
          %s1192 = scalar_lea.hbm %s6, %s1191
          %s1194 = sshll.u32 %s1184, 4
          %s1195 = int_to_ptr.vmem [resolvable:$true] %s1194
          %1197 = dma.vmem_to_hbm [thread:$0]  %s1195, 128, %s1192, %s1181
        $region48: #{tpu_custom_call.1} parent=43 // pred_fallthru
          _
      $region44: #{tpu_custom_call.1} parent=5 // pred_fallthru
        _
      %p1198 = scmp.le.s32.totalorder 2, %s15
      // Predicated region
      $region49: #{tpu_custom_call.1} parent=5 // pred_check
        %p1199 = pneg %p1198
      $region50: #{tpu_custom_call.1} parent=5 // pred_check_branch
        %1201 = sbr.rel (%p1199) target = $region52
      $region51: #{tpu_custom_call.1} parent=5 // pred_region
        %s1202 = ssub.s32 %s15, 2
        // Predicated region
        $region53: #{tpu_custom_call.1} parent=51 // pred_check
          %p1203 = pneg %p175
        $region54: #{tpu_custom_call.1} parent=51 // pred_check_branch
          %1205 = sbr.rel (%p1203) target = $region56
        $region55: #{tpu_custom_call.1} parent=51 // pred_region
          %s1206 = sand.u32 %s160, 1
          %s1207 = scalar_lea.sflag [#allocation3], %s1206
          %s1208 = sand.u32 %s160, 1
          %s1209 = smul.addr %s1208, 8
          %s1210 = scalar_lea.vmem [#allocation2], %s1209
          %1211 = dma.done %s1207, 128
        $region56: #{tpu_custom_call.1} parent=51 // pred_fallthru
          _
      $region52: #{tpu_custom_call.1} parent=5 // pred_fallthru
        _
    $region6: #{tpu_custom_call.1} parent=1 // loop_footer
      %s19 = sadd.s32 1, %s15
    $region7: #{tpu_custom_call.1} parent=1 // loop_footer_branch
      %14 = sbr.rel target = $region3
    $region8: #{tpu_custom_call.1} parent=1 // loop_exit
      _
    %1212 = vsyncpa [#allocation3], 1
    %s1213 = scalar_lea.sflag [#allocation3], 1
    %1214 = vsyncpa %s1213, 1

</llo_original>
